<compile_context>
chip_gen: v6e
topology: v6e:2x2x1
jax: 0.10.0
libtpu: 0.0.40
codegen_flags: <defaults>
</compile_context>

<pallas_src>
import functools
import math

import jax
import jax.numpy as jnp
from jax import lax
from jax.experimental import pallas as pl
from jax.experimental.pallas import tpu as pltpu

# Small, module-consistent shapes.
BATCH = 2
SEQ = 8
DIM = 32
NUM_HEADS = 4
EXPAND = 4
HEAD_DIM = DIM // NUM_HEADS
HIDDEN = DIM * EXPAND
EPS = 1e-5  # nn.LayerNorm default

# Packed per-channel parameter table: one row (128 lanes, zero padded) per vector.
NVEC_ROWS = 16  # padded to a sublane multiple
(_ROW_LN1_G, _ROW_LN1_B, _ROW_PROJ_B, _ROW_ATTN_SCALE,
 _ROW_LN2_G, _ROW_LN2_B, _ROW_FFN2_B, _ROW_MLP_SCALE,
 _ROW_QKV_B, _ROW_FFN1_B) = range(10)


def _layernorm(x, gamma, beta):
    # x: (N, D); gamma/beta: (1, D); all f32
    mean = jnp.mean(x, axis=-1, keepdims=True)
    var = jnp.mean((x - mean) ** 2, axis=-1, keepdims=True)
    return (x - mean) * lax.rsqrt(var + EPS) * gamma + beta


def _gelu_tanh(x):
    # TODO(synk): PyTorch nn.GELU default is the exact erf form; using the tanh
    # approximation for guaranteed Mosaic lowering of the elementwise path.
    c = math.sqrt(2.0 / math.pi)
    return 0.5 * x * (1.0 + jnp.tanh(c * (x + 0.044715 * x * x * x)))


def alt_block_kernel(x_ref, pvec_ref, qkv_w_ref, proj_w_ref, ffn1_w_ref, ffn2_w_ref,
                     o_ref, *, bb, seq):
    """One grid step = `bb` batch rows, flattened to (bb*seq, DIM)."""
    n = bb * seq
    x_in = x_ref[...]                     # (n, D) f32
    vecs = pvec_ref[...]                  # (NVEC_ROWS, 128) f32 packed parameter table

    ln1_g = vecs[_ROW_LN1_G:_ROW_LN1_G + 1, :DIM]
    ln1_b = vecs[_ROW_LN1_B:_ROW_LN1_B + 1, :DIM]
    proj_b = vecs[_ROW_PROJ_B:_ROW_PROJ_B + 1, :DIM]
    attn_s = vecs[_ROW_ATTN_SCALE:_ROW_ATTN_SCALE + 1, :DIM]
    ln2_g = vecs[_ROW_LN2_G:_ROW_LN2_G + 1, :DIM]
    ln2_b = vecs[_ROW_LN2_B:_ROW_LN2_B + 1, :DIM]
    ffn2_b = vecs[_ROW_FFN2_B:_ROW_FFN2_B + 1, :DIM]
    mlp_s = vecs[_ROW_MLP_SCALE:_ROW_MLP_SCALE + 1, :DIM]
    qkv_b = vecs[_ROW_QKV_B:_ROW_QKV_B + 1, :3 * DIM]
    ffn1_b = vecs[_ROW_FFN1_B:_ROW_FFN1_B + 1, :HIDDEN]

    # ---- norm1 (prenorm) ----
    xn = _layernorm(x_in, ln1_g, ln1_b)

    # ---- AltAttention ----
    # qkv = x @ Wqkv + b  -> (n, 3*D); per-head layout [q_h | k_h | v_h] blocks (as in PyTorch)
    qkv = jnp.dot(xn.astype(jnp.bfloat16), qkv_w_ref[...],
                  preferred_element_type=jnp.float32) + qkv_b
    qkv3 = qkv.reshape(bb, seq, 3 * DIM)  # split batch back out (tile-aligned reshape)
    scale = DIM ** (-0.5)                 # full dim, as in the PyTorch module

    attn_x = jnp.zeros((n, DIM), jnp.float32)
    for h in range(NUM_HEADS):            # static unrolled loop; NUM_HEADS is small
        base = h * 3 * HEAD_DIM
        q = qkv3[:, :, base:base + HEAD_DIM]                       # (bb, T, hd) f32
        k = qkv3[:, :, base + HEAD_DIM:base + 2 * HEAD_DIM]
        v = qkv3[:, :, base + 2 * HEAD_DIM:base + 3 * HEAD_DIM]

        # batched over the bb batch rows with a single batch dim (Mosaic-friendly)
        s = jnp.einsum('bqd,bkd->bqk',
                       q.astype(jnp.bfloat16), k.astype(jnp.bfloat16),
                       preferred_element_type=jnp.float32) * scale  # (bb, T, T) f32
        s = s - jnp.max(s, axis=-1, keepdims=True)
        p = jnp.exp(s)
        p = p * pl.reciprocal(jnp.sum(p, axis=-1, keepdims=True), approx=True)
        o = jnp.einsum('bqk,bkd->bqd',
                       p.astype(jnp.bfloat16), v.astype(jnp.bfloat16),
                       preferred_element_type=jnp.float32)          # (bb, T, hd) f32

        # Fold this head straight into the output projection (replaces the concat):
        # sum_h o_h @ Wp[h*hd:(h+1)*hd, :]  ==  concat_h(o_h) @ Wp
        attn_x = attn_x + jnp.dot(
            o.reshape(n, HEAD_DIM).astype(jnp.bfloat16),
            proj_w_ref[h],                                           # (hd, D) bf16
            preferred_element_type=jnp.float32)

    attn_x = attn_x + proj_b
    # DropPath / Dropout are identities in eval; LayerScale = per-channel gamma.
    attn_out = attn_x * attn_s + x_in

    # ---- norm2 + GLU MLP ----
    y = _layernorm(attn_out, ln2_g, ln2_b)
    h1 = jnp.dot(y.astype(jnp.bfloat16), ffn1_w_ref[...],
                 preferred_element_type=jnp.float32) + ffn1_b        # (n, HIDDEN) f32
    glu = h1[:, :HIDDEN // 2] * _gelu_tanh(h1[:, HIDDEN // 2:])      # (n, HIDDEN//2) f32
    y = jnp.dot(glu.astype(jnp.bfloat16), ffn2_w_ref[...],
                preferred_element_type=jnp.float32) + ffn2_b         # (n, D) f32

    # NOTE: output last dim (32) < 128 lanes -> masked stores; negligible here, and a
    # lane-dense layout only pays off when many layers/batches are stacked at the call site.
    o_ref[...] = (y * mlp_s + attn_out).astype(o_ref.dtype)


def pack_params(p):
    """One-time wrapper-side prep: pack small vectors into one table, cast weights to bf16."""
    pv = jnp.zeros((NVEC_ROWS, 128), jnp.float32)
    pv = pv.at[_ROW_LN1_G, :DIM].set(p["ln1_g"][0])
    pv = pv.at[_ROW_LN1_B, :DIM].set(p["ln1_b"][0])
    pv = pv.at[_ROW_PROJ_B, :DIM].set(p["proj_b"][0])
    pv = pv.at[_ROW_ATTN_SCALE, :DIM].set(p["attn_scale"][0])
    pv = pv.at[_ROW_LN2_G, :DIM].set(p["ln2_g"][0])
    pv = pv.at[_ROW_LN2_B, :DIM].set(p["ln2_b"][0])
    pv = pv.at[_ROW_FFN2_B, :DIM].set(p["ffn2_b"][0])
    pv = pv.at[_ROW_MLP_SCALE, :DIM].set(p["mlp_scale"][0])
    pv = pv.at[_ROW_QKV_B, :3 * DIM].set(p["qkv_b"][0])
    pv = pv.at[_ROW_FFN1_B, :HIDDEN].set(p["ffn1_b"][0])
    return {
        "pvec": pv,
        "qkv_w": p["qkv_w"].astype(jnp.bfloat16),                               # (D, 3D)
        "proj_w": p["proj_w"].reshape(NUM_HEADS, HEAD_DIM, DIM).astype(jnp.bfloat16),
        "ffn1_w": p["ffn1_w"].astype(jnp.bfloat16),                             # (D, HIDDEN)
        "ffn2_w": p["ffn2_w"].astype(jnp.bfloat16),                             # (HIDDEN//2, D)
    }


def alt_block(x, packed, *, batch_block=None):
    B, T, D = x.shape
    assert (T, D) == (SEQ, DIM)
    if batch_block is None:
        # v5e/v6e (single TensorCore): fold the whole batch into one grid step.
        # v7x (2 TCs): pass batch_block = B // 2 so the "parallel" axis shards both cores.
        batch_block = B
    assert B % batch_block == 0
    n_steps = B // batch_block
    rows = batch_block * T

    x2 = x.reshape(B * T, D)  # free wrapper-side flatten (metadata only)
    kernel = functools.partial(alt_block_kernel, bb=batch_block, seq=T)

    out = pl.pallas_call(
        kernel,
        out_shape=jax.ShapeDtypeStruct((B * T, D), x.dtype),
        grid=(n_steps,),
        in_specs=[
            pl.BlockSpec((rows, DIM), lambda i: (i, 0)),                   # x slab
            pl.BlockSpec((NVEC_ROWS, 128), lambda i: (0, 0)),              # packed vectors
            pl.BlockSpec((DIM, 3 * DIM), lambda i: (0, 0)),                # qkv W (bf16)
            pl.BlockSpec((NUM_HEADS, HEAD_DIM, DIM), lambda i: (0, 0, 0)),  # proj W (bf16)
            pl.BlockSpec((DIM, HIDDEN), lambda i: (0, 0)),                 # ffn1 W (bf16)
            pl.BlockSpec((HIDDEN // 2, DIM), lambda i: (0, 0)),            # ffn2 W (bf16)
        ],
        out_specs=pl.BlockSpec((rows, DIM), lambda i: (i, 0)),
        compiler_params=pltpu.CompilerParams(
            dimension_semantics=("parallel",)),
    )(x2, packed["pvec"], packed["qkv_w"], packed["proj_w"],
      packed["ffn1_w"], packed["ffn2_w"])
    return out.reshape(B, T, D)


def alt_block_ref(x, p):
    """Pure-JAX f32 reference (mirrors the PyTorch forward in eval mode)."""
    def ln(z, g, b):
        m = z.mean(-1, keepdims=True)
        v = ((z - m) ** 2).mean(-1, keepdims=True)
        return (z - m) / jnp.sqrt(v + EPS) * g[0] + b[0]

    B, T, _ = x.shape
    xn = ln(x, p["ln1_g"], p["ln1_b"])
    qkv = xn @ p["qkv_w"] + p["qkv_b"][0]
    qkv = qkv.reshape(B, T, NUM_HEADS, 3 * HEAD_DIM).transpose(0, 2, 1, 3)
    q, k, v = (qkv[..., :HEAD_DIM],
               qkv[..., HEAD_DIM:2 * HEAD_DIM],
               qkv[..., 2 * HEAD_DIM:])
    attn = jnp.einsum("bhqd,bhkd->bhqk", q, k) * (DIM ** -0.5)
    attn = jax.nn.softmax(attn, axis=-1)
    o = jnp.einsum("bhqk,bhkd->bhqd", attn, v).transpose(0, 2, 1, 3).reshape(B, T, DIM)
    o = o @ p["proj_w"] + p["proj_b"][0]
    o = o * p["attn_scale"][0]
    attn_out = o + x

    y = ln(attn_out, p["ln2_g"], p["ln2_b"])
    h1 = y @ p["ffn1_w"] + p["ffn1_b"][0]
    a, g = h1[..., :HIDDEN // 2], h1[..., HIDDEN // 2:]
    c = math.sqrt(2.0 / math.pi)
    gelu_g = 0.5 * g * (1.0 + jnp.tanh(c * (g + 0.044715 * g ** 3)))
    y = (a * gelu_g) @ p["ffn2_w"] + p["ffn2_b"][0]
    y = y * p["mlp_scale"][0]
    return y + attn_out


def make_params(key):
    ks = jax.random.split(key, 16)
    n = lambda k, shape, s=0.05: (jax.random.normal(k, shape, jnp.float32) * s)
    # Weights stored already transposed to (in, out) so the kernel does x @ W.
    return {
        "ln1_g": jnp.ones((1, DIM), jnp.float32) + n(ks[0], (1, DIM)),
        "ln1_b": n(ks[1], (1, DIM)),
        "qkv_w": n(ks[2], (DIM, 3 * DIM)),
        "qkv_b": n(ks[3], (1, 3 * DIM)),
        "proj_w": n(ks[4], (DIM, DIM)),
        "proj_b": n(ks[5], (1, DIM)),
        # LayerScale: per-channel learnable scale (class not shown upstream).
        "attn_scale": jnp.full((1, DIM), 0.5, jnp.float32) + n(ks[6], (1, DIM)),
        "ln2_g": jnp.ones((1, DIM), jnp.float32) + n(ks[7], (1, DIM)),
        "ln2_b": n(ks[8], (1, DIM)),
        "ffn1_w": n(ks[9], (DIM, HIDDEN)),
        "ffn1_b": n(ks[10], (1, HIDDEN)),
        "ffn2_w": n(ks[11], (HIDDEN // 2, DIM)),
        "ffn2_b": n(ks[12], (1, DIM)),
        "mlp_scale": jnp.full((1, DIM), 0.5, jnp.float32) + n(ks[13], (1, DIM)),
    }


if __name__ == "__main__":
    key = jax.random.PRNGKey(0)
    pkey, xkey = jax.random.split(key)
    params = make_params(pkey)
    packed = pack_params(params)
    x = jax.random.normal(xkey, (BATCH, SEQ, DIM), jnp.float32)

    out = jax.block_until_ready(alt_block(x, packed))

    ref = alt_block_ref(x, params)
    assert out.shape == (BATCH, SEQ, DIM)
    assert jnp.allclose(out, ref, rtol=2e-3, atol=2e-3), (
        f"max abs err {jnp.max(jnp.abs(out - ref))}")
    print("KERNEL_OK")
</pallas_src>

<mosaic_0001>
module attributes {stable_mosaic.version = 11 : i64} {
  func.func @alt_block_kernel(%arg0: i32, %arg1: memref<16x32xf32, #tpu.memory_space<vmem>>, %arg2: memref<16x128xf32, #tpu.memory_space<vmem>>, %arg3: memref<32x96xbf16, #tpu.memory_space<vmem>>, %arg4: memref<4x8x32xbf16, #tpu.memory_space<vmem>>, %arg5: memref<32x128xbf16, #tpu.memory_space<vmem>>, %arg6: memref<64x32xbf16, #tpu.memory_space<vmem>>, %arg7: memref<16x32xf32, #tpu.memory_space<vmem>>) attributes {dimension_semantics = [#tpu.dimension_semantics<parallel>], iteration_bounds = array<i64: 1>, scalar_prefetch = 0 : i64, scratch_operands = 0 : i64, tpu.core_type = #tpu.core_type<tc>, window_params = [{transform_indices = @transform_0, window_bounds = array<i64: 16, 32>}, {pipeline_mode = #tpu.pipeline_mode<synchronous>, transform_indices = @transform_1, window_bounds = array<i64: 16, 128>}, {pipeline_mode = #tpu.pipeline_mode<synchronous>, transform_indices = @transform_2, window_bounds = array<i64: 32, 96>}, {pipeline_mode = #tpu.pipeline_mode<synchronous>, transform_indices = @transform_3, window_bounds = array<i64: 4, 8, 32>}, {pipeline_mode = #tpu.pipeline_mode<synchronous>, transform_indices = @transform_4, window_bounds = array<i64: 32, 128>}, {pipeline_mode = #tpu.pipeline_mode<synchronous>, transform_indices = @transform_5, window_bounds = array<i64: 64, 32>}, {transform_indices = @transform_6, window_bounds = array<i64: 16, 32>}]} {
    %c0 = arith.constant 0 : index
    %c0_0 = arith.constant 0 : index
    %0 = vector.load %arg1[%c0, %c0_0] : memref<16x32xf32, #tpu.memory_space<vmem>>, vector<16x32xf32>
    %c0_1 = arith.constant 0 : index
    %c0_2 = arith.constant 0 : index
    %1 = vector.load %arg2[%c0_1, %c0_2] : memref<16x128xf32, #tpu.memory_space<vmem>>, vector<16x128xf32>
    %2 = vector.extract_strided_slice %1 {offsets = [0, 0], sizes = [1, 32], strides = [1, 1]} : vector<16x128xf32> to vector<1x32xf32>
    %3 = vector.extract_strided_slice %1 {offsets = [1, 0], sizes = [1, 32], strides = [1, 1]} : vector<16x128xf32> to vector<1x32xf32>
    %4 = vector.extract_strided_slice %1 {offsets = [2, 0], sizes = [1, 32], strides = [1, 1]} : vector<16x128xf32> to vector<1x32xf32>
    %5 = vector.extract_strided_slice %1 {offsets = [3, 0], sizes = [1, 32], strides = [1, 1]} : vector<16x128xf32> to vector<1x32xf32>
    %6 = vector.extract_strided_slice %1 {offsets = [4, 0], sizes = [1, 32], strides = [1, 1]} : vector<16x128xf32> to vector<1x32xf32>
    %7 = vector.extract_strided_slice %1 {offsets = [5, 0], sizes = [1, 32], strides = [1, 1]} : vector<16x128xf32> to vector<1x32xf32>
    %8 = vector.extract_strided_slice %1 {offsets = [6, 0], sizes = [1, 32], strides = [1, 1]} : vector<16x128xf32> to vector<1x32xf32>
    %9 = vector.extract_strided_slice %1 {offsets = [7, 0], sizes = [1, 32], strides = [1, 1]} : vector<16x128xf32> to vector<1x32xf32>
    %10 = vector.extract_strided_slice %1 {offsets = [8, 0], sizes = [1, 96], strides = [1, 1]} : vector<16x128xf32> to vector<1x96xf32>
    %11 = vector.extract_strided_slice %1 {offsets = [9, 0], sizes = [1, 128], strides = [1, 1]} : vector<16x128xf32> to vector<1x128xf32>
    %cst = arith.constant dense<0.000000e+00> : vector<16xf32>
    %12 = vector.multi_reduction <add>, %0, %cst [1] : vector<16x32xf32> to vector<16xf32>
    %13 = vector.shape_cast %12 : vector<16xf32> to vector<16x1xf32>
    %cst_3 = arith.constant 3.200000e+01 : f32
    %14 = vector.broadcast %cst_3 : f32 to vector<16x1xf32>
    %15 = arith.divf %13, %14 : vector<16x1xf32>
    %16 = vector.broadcast %15 : vector<16x1xf32> to vector<16x32xf32>
    %17 = arith.subf %0, %16 : vector<16x32xf32>
    %18 = arith.mulf %17, %17 : vector<16x32xf32>
    %cst_4 = arith.constant dense<0.000000e+00> : vector<16xf32>
    %19 = vector.multi_reduction <add>, %18, %cst_4 [1] : vector<16x32xf32> to vector<16xf32>
    %20 = vector.shape_cast %19 : vector<16xf32> to vector<16x1xf32>
    %cst_5 = arith.constant 3.200000e+01 : f32
    %21 = vector.broadcast %cst_5 : f32 to vector<16x1xf32>
    %22 = arith.divf %20, %21 : vector<16x1xf32>
    %23 = vector.broadcast %15 : vector<16x1xf32> to vector<16x32xf32>
    %24 = arith.subf %0, %23 : vector<16x32xf32>
    %cst_6 = arith.constant 9.99999974E-6 : f32
    %25 = vector.broadcast %cst_6 : f32 to vector<16x1xf32>
    %26 = arith.addf %22, %25 : vector<16x1xf32>
    %27 = math.rsqrt %26 : vector<16x1xf32>
    %28 = vector.broadcast %27 : vector<16x1xf32> to vector<16x32xf32>
    %29 = arith.mulf %24, %28 : vector<16x32xf32>
    %30 = vector.broadcast %2 : vector<1x32xf32> to vector<16x32xf32>
    %31 = arith.mulf %29, %30 : vector<16x32xf32>
    %32 = vector.broadcast %3 : vector<1x32xf32> to vector<16x32xf32>
    %33 = arith.addf %31, %32 : vector<16x32xf32>
    %34 = arith.truncf %33 : vector<16x32xf32> to vector<16x32xbf16>
    %c0_7 = arith.constant 0 : index
    %c0_8 = arith.constant 0 : index
    %35 = vector.load %arg3[%c0_7, %c0_8] : memref<32x96xbf16, #tpu.memory_space<vmem>>, vector<32x96xbf16>
    %cst_9 = arith.constant dense<0.000000e+00> : vector<16x96xf32>
    %36 = tpu.matmul %34, %35, %cst_9 {dimension_numbers = #tpu.dot_dimension_numbers<[1], [0], [0], [1], [0, 0, 1, 1], [], []>} : vector<16x32xbf16>, vector<32x96xbf16>, vector<16x96xf32> -> vector<16x96xf32>
    %37 = vector.broadcast %10 : vector<1x96xf32> to vector<16x96xf32>
    %38 = arith.addf %36, %37 : vector<16x96xf32>
    %39 = vector.shape_cast %38 : vector<16x96xf32> to vector<2x8x96xf32>
    %cst_10 = arith.constant 0.000000e+00 : f32
    %40 = vector.broadcast %cst_10 : f32 to vector<16x32xf32>
    %41 = vector.extract_strided_slice %39 {offsets = [0, 0, 0], sizes = [2, 8, 8], strides = [1, 1, 1]} : vector<2x8x96xf32> to vector<2x8x8xf32>
    %42 = vector.extract_strided_slice %39 {offsets = [0, 0, 8], sizes = [2, 8, 8], strides = [1, 1, 1]} : vector<2x8x96xf32> to vector<2x8x8xf32>
    %43 = vector.extract_strided_slice %39 {offsets = [0, 0, 16], sizes = [2, 8, 8], strides = [1, 1, 1]} : vector<2x8x96xf32> to vector<2x8x8xf32>
    %44 = arith.truncf %41 : vector<2x8x8xf32> to vector<2x8x8xbf16>
    %45 = arith.truncf %42 : vector<2x8x8xf32> to vector<2x8x8xbf16>
    "tpu.trace_start"() <{level = 10 : i32, message = "bqd,bkd->bqk"}> : () -> ()
    %cst_11 = arith.constant dense<0.000000e+00> : vector<2x8x8xf32>
    %46 = tpu.matmul %44, %45, %cst_11 {dimension_numbers = #tpu.dot_dimension_numbers<[2], [2], [1], [1], [0, 0, 0, 1, 1, 1], [0], [0]>} : vector<2x8x8xbf16>, vector<2x8x8xbf16>, vector<2x8x8xf32> -> vector<2x8x8xf32>
    "tpu.trace_stop"() : () -> ()
    %cst_12 = arith.constant 0.176776692 : f32
    %47 = vector.broadcast %cst_12 : f32 to vector<2x8x8xf32>
    %48 = arith.mulf %46, %47 : vector<2x8x8xf32>
    %cst_13 = arith.constant dense<0xFF800000> : vector<2x8xf32>
    %49 = vector.multi_reduction <maximumf>, %48, %cst_13 [2] : vector<2x8x8xf32> to vector<2x8xf32>
    %50 = vector.shape_cast %49 : vector<2x8xf32> to vector<2x8x1xf32>
    %51 = vector.broadcast %50 : vector<2x8x1xf32> to vector<2x8x8xf32>
    %52 = arith.subf %48, %51 : vector<2x8x8xf32>
    %53 = math.exp %52 : vector<2x8x8xf32>
    %cst_14 = arith.constant dense<0.000000e+00> : vector<2x8xf32>
    %54 = vector.multi_reduction <add>, %53, %cst_14 [2] : vector<2x8x8xf32> to vector<2x8xf32>
    %55 = vector.shape_cast %54 : vector<2x8xf32> to vector<2x8x1xf32>
    %56 = tpu.reciprocal %55 {approx = true} : vector<2x8x1xf32> -> vector<2x8x1xf32>
    %57 = vector.broadcast %56 : vector<2x8x1xf32> to vector<2x8x8xf32>
    %58 = arith.mulf %53, %57 : vector<2x8x8xf32>
    %59 = arith.truncf %58 : vector<2x8x8xf32> to vector<2x8x8xbf16>
    %60 = arith.truncf %43 : vector<2x8x8xf32> to vector<2x8x8xbf16>
    "tpu.trace_start"() <{level = 10 : i32, message = "bqk,bkd->bqd"}> : () -> ()
    %cst_15 = arith.constant dense<0.000000e+00> : vector<2x8x8xf32>
    %61 = tpu.matmul %59, %60, %cst_15 {dimension_numbers = #tpu.dot_dimension_numbers<[2], [1], [1], [2], [0, 0, 0, 1, 1, 2], [0], [0]>} : vector<2x8x8xbf16>, vector<2x8x8xbf16>, vector<2x8x8xf32> -> vector<2x8x8xf32>
    "tpu.trace_stop"() : () -> ()
    %62 = vector.shape_cast %61 : vector<2x8x8xf32> to vector<16x8xf32>
    %63 = arith.truncf %62 : vector<16x8xf32> to vector<16x8xbf16>
    %c0_16 = arith.constant 0 : index
    %c0_17 = arith.constant 0 : index
    %c0_18 = arith.constant 0 : index
    %64 = vector.load %arg4[%c0_16, %c0_17, %c0_18] : memref<4x8x32xbf16, #tpu.memory_space<vmem>>, vector<1x8x32xbf16>
    %65 = vector.shape_cast %64 : vector<1x8x32xbf16> to vector<8x32xbf16>
    %cst_19 = arith.constant dense<0.000000e+00> : vector<16x32xf32>
    %66 = tpu.matmul %63, %65, %cst_19 {dimension_numbers = #tpu.dot_dimension_numbers<[1], [0], [0], [1], [0, 0, 1, 1], [], []>} : vector<16x8xbf16>, vector<8x32xbf16>, vector<16x32xf32> -> vector<16x32xf32>
    %67 = arith.addf %40, %66 : vector<16x32xf32>
    %68 = vector.extract_strided_slice %39 {offsets = [0, 0, 24], sizes = [2, 8, 8], strides = [1, 1, 1]} : vector<2x8x96xf32> to vector<2x8x8xf32>
    %69 = vector.extract_strided_slice %39 {offsets = [0, 0, 32], sizes = [2, 8, 8], strides = [1, 1, 1]} : vector<2x8x96xf32> to vector<2x8x8xf32>
    %70 = vector.extract_strided_slice %39 {offsets = [0, 0, 40], sizes = [2, 8, 8], strides = [1, 1, 1]} : vector<2x8x96xf32> to vector<2x8x8xf32>
    %71 = arith.truncf %68 : vector<2x8x8xf32> to vector<2x8x8xbf16>
    %72 = arith.truncf %69 : vector<2x8x8xf32> to vector<2x8x8xbf16>
    "tpu.trace_start"() <{level = 10 : i32, message = "bqd,bkd->bqk"}> : () -> ()
    %cst_20 = arith.constant dense<0.000000e+00> : vector<2x8x8xf32>
    %73 = tpu.matmul %71, %72, %cst_20 {dimension_numbers = #tpu.dot_dimension_numbers<[2], [2], [1], [1], [0, 0, 0, 1, 1, 1], [0], [0]>} : vector<2x8x8xbf16>, vector<2x8x8xbf16>, vector<2x8x8xf32> -> vector<2x8x8xf32>
    "tpu.trace_stop"() : () -> ()
    %cst_21 = arith.constant 0.176776692 : f32
    %74 = vector.broadcast %cst_21 : f32 to vector<2x8x8xf32>
    %75 = arith.mulf %73, %74 : vector<2x8x8xf32>
    %cst_22 = arith.constant dense<0xFF800000> : vector<2x8xf32>
    %76 = vector.multi_reduction <maximumf>, %75, %cst_22 [2] : vector<2x8x8xf32> to vector<2x8xf32>
    %77 = vector.shape_cast %76 : vector<2x8xf32> to vector<2x8x1xf32>
    %78 = vector.broadcast %77 : vector<2x8x1xf32> to vector<2x8x8xf32>
    %79 = arith.subf %75, %78 : vector<2x8x8xf32>
    %80 = math.exp %79 : vector<2x8x8xf32>
    %cst_23 = arith.constant dense<0.000000e+00> : vector<2x8xf32>
    %81 = vector.multi_reduction <add>, %80, %cst_23 [2] : vector<2x8x8xf32> to vector<2x8xf32>
    %82 = vector.shape_cast %81 : vector<2x8xf32> to vector<2x8x1xf32>
    %83 = tpu.reciprocal %82 {approx = true} : vector<2x8x1xf32> -> vector<2x8x1xf32>
    %84 = vector.broadcast %83 : vector<2x8x1xf32> to vector<2x8x8xf32>
    %85 = arith.mulf %80, %84 : vector<2x8x8xf32>
    %86 = arith.truncf %85 : vector<2x8x8xf32> to vector<2x8x8xbf16>
    %87 = arith.truncf %70 : vector<2x8x8xf32> to vector<2x8x8xbf16>
    "tpu.trace_start"() <{level = 10 : i32, message = "bqk,bkd->bqd"}> : () -> ()
    %cst_24 = arith.constant dense<0.000000e+00> : vector<2x8x8xf32>
    %88 = tpu.matmul %86, %87, %cst_24 {dimension_numbers = #tpu.dot_dimension_numbers<[2], [1], [1], [2], [0, 0, 0, 1, 1, 2], [0], [0]>} : vector<2x8x8xbf16>, vector<2x8x8xbf16>, vector<2x8x8xf32> -> vector<2x8x8xf32>
    "tpu.trace_stop"() : () -> ()
    %89 = vector.shape_cast %88 : vector<2x8x8xf32> to vector<16x8xf32>
    %90 = arith.truncf %89 : vector<16x8xf32> to vector<16x8xbf16>
    %c1 = arith.constant 1 : index
    %c0_25 = arith.constant 0 : index
    %c0_26 = arith.constant 0 : index
    %91 = vector.load %arg4[%c1, %c0_25, %c0_26] : memref<4x8x32xbf16, #tpu.memory_space<vmem>>, vector<1x8x32xbf16>
    %92 = vector.shape_cast %91 : vector<1x8x32xbf16> to vector<8x32xbf16>
    %cst_27 = arith.constant dense<0.000000e+00> : vector<16x32xf32>
    %93 = tpu.matmul %90, %92, %cst_27 {dimension_numbers = #tpu.dot_dimension_numbers<[1], [0], [0], [1], [0, 0, 1, 1], [], []>} : vector<16x8xbf16>, vector<8x32xbf16>, vector<16x32xf32> -> vector<16x32xf32>
    %94 = arith.addf %67, %93 : vector<16x32xf32>
    %95 = vector.extract_strided_slice %39 {offsets = [0, 0, 48], sizes = [2, 8, 8], strides = [1, 1, 1]} : vector<2x8x96xf32> to vector<2x8x8xf32>
    %96 = vector.extract_strided_slice %39 {offsets = [0, 0, 56], sizes = [2, 8, 8], strides = [1, 1, 1]} : vector<2x8x96xf32> to vector<2x8x8xf32>
    %97 = vector.extract_strided_slice %39 {offsets = [0, 0, 64], sizes = [2, 8, 8], strides = [1, 1, 1]} : vector<2x8x96xf32> to vector<2x8x8xf32>
    %98 = arith.truncf %95 : vector<2x8x8xf32> to vector<2x8x8xbf16>
    %99 = arith.truncf %96 : vector<2x8x8xf32> to vector<2x8x8xbf16>
    "tpu.trace_start"() <{level = 10 : i32, message = "bqd,bkd->bqk"}> : () -> ()
    %cst_28 = arith.constant dense<0.000000e+00> : vector<2x8x8xf32>
    %100 = tpu.matmul %98, %99, %cst_28 {dimension_numbers = #tpu.dot_dimension_numbers<[2], [2], [1], [1], [0, 0, 0, 1, 1, 1], [0], [0]>} : vector<2x8x8xbf16>, vector<2x8x8xbf16>, vector<2x8x8xf32> -> vector<2x8x8xf32>
    "tpu.trace_stop"() : () -> ()
    %cst_29 = arith.constant 0.176776692 : f32
    %101 = vector.broadcast %cst_29 : f32 to vector<2x8x8xf32>
    %102 = arith.mulf %100, %101 : vector<2x8x8xf32>
    %cst_30 = arith.constant dense<0xFF800000> : vector<2x8xf32>
    %103 = vector.multi_reduction <maximumf>, %102, %cst_30 [2] : vector<2x8x8xf32> to vector<2x8xf32>
    %104 = vector.shape_cast %103 : vector<2x8xf32> to vector<2x8x1xf32>
    %105 = vector.broadcast %104 : vector<2x8x1xf32> to vector<2x8x8xf32>
    %106 = arith.subf %102, %105 : vector<2x8x8xf32>
    %107 = math.exp %106 : vector<2x8x8xf32>
    %cst_31 = arith.constant dense<0.000000e+00> : vector<2x8xf32>
    %108 = vector.multi_reduction <add>, %107, %cst_31 [2] : vector<2x8x8xf32> to vector<2x8xf32>
    %109 = vector.shape_cast %108 : vector<2x8xf32> to vector<2x8x1xf32>
    %110 = tpu.reciprocal %109 {approx = true} : vector<2x8x1xf32> -> vector<2x8x1xf32>
    %111 = vector.broadcast %110 : vector<2x8x1xf32> to vector<2x8x8xf32>
    %112 = arith.mulf %107, %111 : vector<2x8x8xf32>
    %113 = arith.truncf %112 : vector<2x8x8xf32> to vector<2x8x8xbf16>
    %114 = arith.truncf %97 : vector<2x8x8xf32> to vector<2x8x8xbf16>
    "tpu.trace_start"() <{level = 10 : i32, message = "bqk,bkd->bqd"}> : () -> ()
    %cst_32 = arith.constant dense<0.000000e+00> : vector<2x8x8xf32>
    %115 = tpu.matmul %113, %114, %cst_32 {dimension_numbers = #tpu.dot_dimension_numbers<[2], [1], [1], [2], [0, 0, 0, 1, 1, 2], [0], [0]>} : vector<2x8x8xbf16>, vector<2x8x8xbf16>, vector<2x8x8xf32> -> vector<2x8x8xf32>
    "tpu.trace_stop"() : () -> ()
    %116 = vector.shape_cast %115 : vector<2x8x8xf32> to vector<16x8xf32>
    %117 = arith.truncf %116 : vector<16x8xf32> to vector<16x8xbf16>
    %c2 = arith.constant 2 : index
    %c0_33 = arith.constant 0 : index
    %c0_34 = arith.constant 0 : index
    %118 = vector.load %arg4[%c2, %c0_33, %c0_34] : memref<4x8x32xbf16, #tpu.memory_space<vmem>>, vector<1x8x32xbf16>
    %119 = vector.shape_cast %118 : vector<1x8x32xbf16> to vector<8x32xbf16>
    %cst_35 = arith.constant dense<0.000000e+00> : vector<16x32xf32>
    %120 = tpu.matmul %117, %119, %cst_35 {dimension_numbers = #tpu.dot_dimension_numbers<[1], [0], [0], [1], [0, 0, 1, 1], [], []>} : vector<16x8xbf16>, vector<8x32xbf16>, vector<16x32xf32> -> vector<16x32xf32>
    %121 = arith.addf %94, %120 : vector<16x32xf32>
    %122 = vector.extract_strided_slice %39 {offsets = [0, 0, 72], sizes = [2, 8, 8], strides = [1, 1, 1]} : vector<2x8x96xf32> to vector<2x8x8xf32>
    %123 = vector.extract_strided_slice %39 {offsets = [0, 0, 80], sizes = [2, 8, 8], strides = [1, 1, 1]} : vector<2x8x96xf32> to vector<2x8x8xf32>
    %124 = vector.extract_strided_slice %39 {offsets = [0, 0, 88], sizes = [2, 8, 8], strides = [1, 1, 1]} : vector<2x8x96xf32> to vector<2x8x8xf32>
    %125 = arith.truncf %122 : vector<2x8x8xf32> to vector<2x8x8xbf16>
    %126 = arith.truncf %123 : vector<2x8x8xf32> to vector<2x8x8xbf16>
    "tpu.trace_start"() <{level = 10 : i32, message = "bqd,bkd->bqk"}> : () -> ()
    %cst_36 = arith.constant dense<0.000000e+00> : vector<2x8x8xf32>
    %127 = tpu.matmul %125, %126, %cst_36 {dimension_numbers = #tpu.dot_dimension_numbers<[2], [2], [1], [1], [0, 0, 0, 1, 1, 1], [0], [0]>} : vector<2x8x8xbf16>, vector<2x8x8xbf16>, vector<2x8x8xf32> -> vector<2x8x8xf32>
    "tpu.trace_stop"() : () -> ()
    %cst_37 = arith.constant 0.176776692 : f32
    %128 = vector.broadcast %cst_37 : f32 to vector<2x8x8xf32>
    %129 = arith.mulf %127, %128 : vector<2x8x8xf32>
    %cst_38 = arith.constant dense<0xFF800000> : vector<2x8xf32>
    %130 = vector.multi_reduction <maximumf>, %129, %cst_38 [2] : vector<2x8x8xf32> to vector<2x8xf32>
    %131 = vector.shape_cast %130 : vector<2x8xf32> to vector<2x8x1xf32>
    %132 = vector.broadcast %131 : vector<2x8x1xf32> to vector<2x8x8xf32>
    %133 = arith.subf %129, %132 : vector<2x8x8xf32>
    %134 = math.exp %133 : vector<2x8x8xf32>
    %cst_39 = arith.constant dense<0.000000e+00> : vector<2x8xf32>
    %135 = vector.multi_reduction <add>, %134, %cst_39 [2] : vector<2x8x8xf32> to vector<2x8xf32>
    %136 = vector.shape_cast %135 : vector<2x8xf32> to vector<2x8x1xf32>
    %137 = tpu.reciprocal %136 {approx = true} : vector<2x8x1xf32> -> vector<2x8x1xf32>
    %138 = vector.broadcast %137 : vector<2x8x1xf32> to vector<2x8x8xf32>
    %139 = arith.mulf %134, %138 : vector<2x8x8xf32>
    %140 = arith.truncf %139 : vector<2x8x8xf32> to vector<2x8x8xbf16>
    %141 = arith.truncf %124 : vector<2x8x8xf32> to vector<2x8x8xbf16>
    "tpu.trace_start"() <{level = 10 : i32, message = "bqk,bkd->bqd"}> : () -> ()
    %cst_40 = arith.constant dense<0.000000e+00> : vector<2x8x8xf32>
    %142 = tpu.matmul %140, %141, %cst_40 {dimension_numbers = #tpu.dot_dimension_numbers<[2], [1], [1], [2], [0, 0, 0, 1, 1, 2], [0], [0]>} : vector<2x8x8xbf16>, vector<2x8x8xbf16>, vector<2x8x8xf32> -> vector<2x8x8xf32>
    "tpu.trace_stop"() : () -> ()
    %143 = vector.shape_cast %142 : vector<2x8x8xf32> to vector<16x8xf32>
    %144 = arith.truncf %143 : vector<16x8xf32> to vector<16x8xbf16>
    %c3 = arith.constant 3 : index
    %c0_41 = arith.constant 0 : index
    %c0_42 = arith.constant 0 : index
    %145 = vector.load %arg4[%c3, %c0_41, %c0_42] : memref<4x8x32xbf16, #tpu.memory_space<vmem>>, vector<1x8x32xbf16>
    %146 = vector.shape_cast %145 : vector<1x8x32xbf16> to vector<8x32xbf16>
    %cst_43 = arith.constant dense<0.000000e+00> : vector<16x32xf32>
    %147 = tpu.matmul %144, %146, %cst_43 {dimension_numbers = #tpu.dot_dimension_numbers<[1], [0], [0], [1], [0, 0, 1, 1], [], []>} : vector<16x8xbf16>, vector<8x32xbf16>, vector<16x32xf32> -> vector<16x32xf32>
    %148 = arith.addf %121, %147 : vector<16x32xf32>
    %149 = vector.broadcast %4 : vector<1x32xf32> to vector<16x32xf32>
    %150 = arith.addf %148, %149 : vector<16x32xf32>
    %151 = vector.broadcast %5 : vector<1x32xf32> to vector<16x32xf32>
    %152 = arith.mulf %150, %151 : vector<16x32xf32>
    %153 = arith.addf %152, %0 : vector<16x32xf32>
    %cst_44 = arith.constant dense<0.000000e+00> : vector<16xf32>
    %154 = vector.multi_reduction <add>, %153, %cst_44 [1] : vector<16x32xf32> to vector<16xf32>
    %155 = vector.shape_cast %154 : vector<16xf32> to vector<16x1xf32>
    %cst_45 = arith.constant 3.200000e+01 : f32
    %156 = vector.broadcast %cst_45 : f32 to vector<16x1xf32>
    %157 = arith.divf %155, %156 : vector<16x1xf32>
    %158 = vector.broadcast %157 : vector<16x1xf32> to vector<16x32xf32>
    %159 = arith.subf %153, %158 : vector<16x32xf32>
    %160 = arith.mulf %159, %159 : vector<16x32xf32>
    %cst_46 = arith.constant dense<0.000000e+00> : vector<16xf32>
    %161 = vector.multi_reduction <add>, %160, %cst_46 [1] : vector<16x32xf32> to vector<16xf32>
    %162 = vector.shape_cast %161 : vector<16xf32> to vector<16x1xf32>
    %cst_47 = arith.constant 3.200000e+01 : f32
    %163 = vector.broadcast %cst_47 : f32 to vector<16x1xf32>
    %164 = arith.divf %162, %163 : vector<16x1xf32>
    %165 = vector.broadcast %157 : vector<16x1xf32> to vector<16x32xf32>
    %166 = arith.subf %153, %165 : vector<16x32xf32>
    %cst_48 = arith.constant 9.99999974E-6 : f32
    %167 = vector.broadcast %cst_48 : f32 to vector<16x1xf32>
    %168 = arith.addf %164, %167 : vector<16x1xf32>
    %169 = math.rsqrt %168 : vector<16x1xf32>
    %170 = vector.broadcast %169 : vector<16x1xf32> to vector<16x32xf32>
    %171 = arith.mulf %166, %170 : vector<16x32xf32>
    %172 = vector.broadcast %6 : vector<1x32xf32> to vector<16x32xf32>
    %173 = arith.mulf %171, %172 : vector<16x32xf32>
    %174 = vector.broadcast %7 : vector<1x32xf32> to vector<16x32xf32>
    %175 = arith.addf %173, %174 : vector<16x32xf32>
    %176 = arith.truncf %175 : vector<16x32xf32> to vector<16x32xbf16>
    %c0_49 = arith.constant 0 : index
    %c0_50 = arith.constant 0 : index
    %177 = vector.load %arg5[%c0_49, %c0_50] : memref<32x128xbf16, #tpu.memory_space<vmem>>, vector<32x128xbf16>
    %cst_51 = arith.constant dense<0.000000e+00> : vector<16x128xf32>
    %178 = tpu.matmul %176, %177, %cst_51 {dimension_numbers = #tpu.dot_dimension_numbers<[1], [0], [0], [1], [0, 0, 1, 1], [], []>} : vector<16x32xbf16>, vector<32x128xbf16>, vector<16x128xf32> -> vector<16x128xf32>
    %179 = vector.broadcast %11 : vector<1x128xf32> to vector<16x128xf32>
    %180 = arith.addf %178, %179 : vector<16x128xf32>
    %181 = vector.extract_strided_slice %180 {offsets = [0, 0], sizes = [16, 64], strides = [1, 1]} : vector<16x128xf32> to vector<16x64xf32>
    %182 = vector.extract_strided_slice %180 {offsets = [0, 64], sizes = [16, 64], strides = [1, 1]} : vector<16x128xf32> to vector<16x64xf32>
    %cst_52 = arith.constant 5.000000e-01 : f32
    %183 = vector.broadcast %cst_52 : f32 to vector<16x64xf32>
    %184 = arith.mulf %183, %182 : vector<16x64xf32>
    %cst_53 = arith.constant 4.471500e-02 : f32
    %185 = vector.broadcast %cst_53 : f32 to vector<16x64xf32>
    %186 = arith.mulf %185, %182 : vector<16x64xf32>
    %187 = arith.mulf %186, %182 : vector<16x64xf32>
    %188 = arith.mulf %187, %182 : vector<16x64xf32>
    %189 = arith.addf %182, %188 : vector<16x64xf32>
    %cst_54 = arith.constant 0.797884583 : f32
    %190 = vector.broadcast %cst_54 : f32 to vector<16x64xf32>
    %191 = arith.mulf %190, %189 : vector<16x64xf32>
    %192 = math.tanh %191 : vector<16x64xf32>
    %cst_55 = arith.constant 1.000000e+00 : f32
    %193 = vector.broadcast %cst_55 : f32 to vector<16x64xf32>
    %194 = arith.addf %193, %192 : vector<16x64xf32>
    %195 = arith.mulf %184, %194 : vector<16x64xf32>
    %196 = arith.mulf %181, %195 : vector<16x64xf32>
    %197 = arith.truncf %196 : vector<16x64xf32> to vector<16x64xbf16>
    %c0_56 = arith.constant 0 : index
    %c0_57 = arith.constant 0 : index
    %198 = vector.load %arg6[%c0_56, %c0_57] : memref<64x32xbf16, #tpu.memory_space<vmem>>, vector<64x32xbf16>
    %cst_58 = arith.constant dense<0.000000e+00> : vector<16x32xf32>
    %199 = tpu.matmul %197, %198, %cst_58 {dimension_numbers = #tpu.dot_dimension_numbers<[1], [0], [0], [1], [0, 0, 1, 1], [], []>} : vector<16x64xbf16>, vector<64x32xbf16>, vector<16x32xf32> -> vector<16x32xf32>
    %200 = vector.broadcast %8 : vector<1x32xf32> to vector<16x32xf32>
    %201 = arith.addf %199, %200 : vector<16x32xf32>
    %202 = vector.broadcast %9 : vector<1x32xf32> to vector<16x32xf32>
    %203 = arith.mulf %201, %202 : vector<16x32xf32>
    %204 = arith.addf %203, %153 : vector<16x32xf32>
    %c0_59 = arith.constant 0 : index
    %c0_60 = arith.constant 0 : index
    %205 = vector.load %arg7[%c0_59, %c0_60] : memref<16x32xf32, #tpu.memory_space<vmem>>, vector<16x32xf32>
    tpu.vector_store %arg7[%c0_59, %c0_60], %204 {strides = array<i32>} : memref<16x32xf32, #tpu.memory_space<vmem>>, vector<16x32xf32>,
    return
  }
  func.func @transform_0(%arg0: i32) -> (i32, i32) {
    %c0_i32 = arith.constant 0 : i32
    %c0_i32_0 = arith.constant 0 : i32
    return %arg0, %c0_i32 : i32, i32
  }
  func.func @transform_1(%arg0: i32) -> (i32, i32) {
    %c0_i32 = arith.constant 0 : i32
    %c0_i32_0 = arith.constant 0 : i32
    %c0_i32_1 = arith.constant 0 : i32
    return %c0_i32, %c0_i32_0 : i32, i32
  }
  func.func @transform_2(%arg0: i32) -> (i32, i32) {
    %c0_i32 = arith.constant 0 : i32
    %c0_i32_0 = arith.constant 0 : i32
    %c0_i32_1 = arith.constant 0 : i32
    return %c0_i32, %c0_i32_0 : i32, i32
  }
  func.func @transform_3(%arg0: i32) -> (i32, i32, i32) {
    %c0_i32 = arith.constant 0 : i32
    %c0_i32_0 = arith.constant 0 : i32
    %c0_i32_1 = arith.constant 0 : i32
    %c0_i32_2 = arith.constant 0 : i32
    return %c0_i32, %c0_i32_0, %c0_i32_1 : i32, i32, i32
  }
  func.func @transform_4(%arg0: i32) -> (i32, i32) {
    %c0_i32 = arith.constant 0 : i32
    %c0_i32_0 = arith.constant 0 : i32
    %c0_i32_1 = arith.constant 0 : i32
    return %c0_i32, %c0_i32_0 : i32, i32
  }
  func.func @transform_5(%arg0: i32) -> (i32, i32) {
    %c0_i32 = arith.constant 0 : i32
    %c0_i32_0 = arith.constant 0 : i32
    %c0_i32_1 = arith.constant 0 : i32
    return %c0_i32, %c0_i32_0 : i32, i32
  }
  func.func @transform_6(%arg0: i32) -> (i32, i32) {
    %c0_i32 = arith.constant 0 : i32
    %c0_i32_0 = arith.constant 0 : i32
    return %arg0, %c0_i32 : i32, i32
  }
}

</mosaic_0001>

<llo_original>
// kernel: tpu_custom_call.1
$region0: #{tpu_custom_call.1}
  #allocation0 [shape = 'u32[]', space=smem, size = 0x4, offset = 0x4, fixed_abs, tag = 'smem constant byte address 0x4 - core index']
  #allocation1 [shape = 'u32[144,128]{1,0:T(1,128)}', space=vmem, size = 0x12000, scoped, tag = 'internal scratch']
  %s0 = inlined_call_operand.vmem [shape: f32[16,32], index: 0, kind: input, shape index: {}]
  %s1 = inlined_call_operand.vmem [shape: f32[16,128], index: 1, kind: input, shape index: {}]
  %s2 = inlined_call_operand.vmem [shape: bf16[32,96], index: 2, kind: input, shape index: {}]
  %s3 = inlined_call_operand.hbm [shape: bf16[4,8,32], index: 3, kind: input, shape index: {}]
  %s4 = inlined_call_operand.hbm [shape: bf16[32,128], index: 4, kind: input, shape index: {}]
  %s5 = inlined_call_operand.vmem [shape: bf16[64,32], index: 5, kind: input, shape index: {}]
  %s6 = inlined_call_operand.hbm [shape: f32[16,32], index: 6, kind: output, shape index: {}]
  %s7 = sld [smem:[#allocation0]]
  $region42: #{tpu_custom_call.1} parent=0
    _
  %s9 = ssub.s32 1, %s7
  %s10 = scalar_select 0, %s9, %s7
  $region1: #{tpu_custom_call.1} parent=0
    #allocation2 [shape = 'u8[8192]{0}', space=vmem, size = 0x2000, scoped, tag = 'input window, operand 3, single buffered']
    #allocation3 [shape = 's32[1]{0}', space=sflag, size = 0x4, scoped, tag = 'scoped memory for tpu_custom_call.1']
    #allocation4 [shape = 's32[1]{0}', space=sflag, size = 0x4, scoped, tag = 'scoped memory for tpu_custom_call.1']
    #allocation5 [shape = 'u8[8192]{0}', space=vmem, size = 0x2000, scoped, tag = 'input window, operand 4, single buffered']
    #allocation6 [shape = 's32[1]{0}', space=sflag, size = 0x4, scoped, tag = 'scoped memory for tpu_custom_call.1']
    #allocation7 [shape = 'u8[8192]{0}', space=vmem, size = 0x2000, scoped, tag = 'output window, operand 0, single buffered']
    %11 = vsyncpa [#allocation3], 0
    %12 = vsyncpa [#allocation6], 0
    %13 = vsyncpa [#allocation4], 0
    // Predicated region
    $region2: #{tpu_custom_call.1} parent=1 // pred_check
      _
    $region3: #{tpu_custom_call.1} parent=1 // pred_check_branch
      %15 = sbr.rel (0) target = $region5
    $region4: #{tpu_custom_call.1} parent=1 // pred_region
      _
    $region5: #{tpu_custom_call.1} parent=1 // pred_fallthru
      _
    // Predicated region
    $region6: #{tpu_custom_call.1} parent=1 // pred_check
      _
    $region7: #{tpu_custom_call.1} parent=1 // pred_check_branch
      %17 = sbr.rel (0) target = $region9
    $region8: #{tpu_custom_call.1} parent=1 // pred_region
      _
    $region9: #{tpu_custom_call.1} parent=1 // pred_fallthru
      _
    // Predicated region
    $region10: #{tpu_custom_call.1} parent=1 // pred_check
      _
    $region11: #{tpu_custom_call.1} parent=1 // pred_check_branch
      %19 = sbr.rel (0) target = $region13
    $region12: #{tpu_custom_call.1} parent=1 // pred_region
      _
    $region13: #{tpu_custom_call.1} parent=1 // pred_fallthru
      _
    // Predicated region
    $region14: #{tpu_custom_call.1} parent=1 // pred_check
      _
    $region15: #{tpu_custom_call.1} parent=1 // pred_check_branch
      %21 = sbr.rel (0) target = $region17
    $region16: #{tpu_custom_call.1} parent=1 // pred_region
      %s23 = ssub.s32 256, 256
      %24 = vsyncadd [#allocation3], %s23
      %s25 = sshll.u32 [#allocation2], 4
      %s26 = int_to_ptr.vmem [resolvable:$true] %s25
      %31 = dma.hbm_to_vmem [thread:$0]  %s3, 256, %s26, [#allocation3], 64, 64, 4
    $region17: #{tpu_custom_call.1} parent=1 // pred_fallthru
      _
    // Predicated region
    $region18: #{tpu_custom_call.1} parent=1 // pred_check
      _
    $region19: #{tpu_custom_call.1} parent=1 // pred_check_branch
      %33 = sbr.rel (0) target = $region21
    $region20: #{tpu_custom_call.1} parent=1 // pred_region
      %s35 = ssub.s32 256, 256
      %36 = vsyncadd [#allocation6], %s35
      %s37 = sshll.u32 [#allocation5], 4
      %s38 = int_to_ptr.vmem [resolvable:$true] %s37
      %43 = dma.hbm_to_vmem [thread:$0]  %s4, 256, %s38, [#allocation6], 64, 64, 4
    $region21: #{tpu_custom_call.1} parent=1 // pred_fallthru
      _
    // Predicated region
    $region22: #{tpu_custom_call.1} parent=1 // pred_check
      _
    $region23: #{tpu_custom_call.1} parent=1 // pred_check_branch
      %45 = sbr.rel (0) target = $region25
    $region24: #{tpu_custom_call.1} parent=1 // pred_region
      _
    $region25: #{tpu_custom_call.1} parent=1 // pred_fallthru
      _
    // Predicated region
    $region26: #{tpu_custom_call.1} parent=1 // pred_check
      _
    $region27: #{tpu_custom_call.1} parent=1 // pred_check_branch
      %47 = sbr.rel (0) target = $region29
    $region28: #{tpu_custom_call.1} parent=1 // pred_region
      %48 = dma.done [#allocation3], 256
    $region29: #{tpu_custom_call.1} parent=1 // pred_fallthru
      _
    // Predicated region
    $region30: #{tpu_custom_call.1} parent=1 // pred_check
      _
    $region31: #{tpu_custom_call.1} parent=1 // pred_check_branch
      %50 = sbr.rel (0) target = $region33
    $region32: #{tpu_custom_call.1} parent=1 // pred_region
      %51 = dma.done [#allocation6], 256
    $region33: #{tpu_custom_call.1} parent=1 // pred_fallthru
      _
    %v53 = vld [vmem:[%s0] sm:$0xff]
    %v54 = vld [vmem:[%s0 + $0x8] sm:$0xff]
    %v55 = vld [vmem:[%s1] sm:$0xff]
    %v56 = vld [vmem:[%s1 + $0x8] sm:$0xff]
    %vm57 = vcmask 261120
    %v58 = vsel %vm57, %v53, 0.0
    %59 = vadd.xlane.f32.xlu0 %v58
    %v60 = vpop.xlane.xlu0 %59
    %v61 = vsel %vm57, %v54, 0.0
    %62 = vadd.xlane.f32.xlu0 %v61
    %v63 = vpop.xlane.xlu0 %62
    %v64 = vrcp.pop 32.0
    %v65 = vmul.f32 %v60, %v64
    %v66 = vmul.f32 %v63, %v64
    %v67 = vsub.f32 %v53, %v65
    %v68 = vsub.f32 %v54, %v66
    %v69 = vmul.f32 %v67, %v67
    %v70 = vmul.f32 %v68, %v68
    %v71 = vsel %vm57, %v69, 0.0
    %72 = vadd.xlane.f32.xlu0 %v71
    %v73 = vpop.xlane.xlu0 %72
    %v74 = vsel %vm57, %v70, 0.0
    %75 = vadd.xlane.f32.xlu0 %v74
    %v76 = vpop.xlane.xlu0 %75
    %v77 = vmul.f32 %v73, %v64
    %v78 = vmul.f32 %v76, %v64
    %v79 = vadd.f32 %v77, 1e-05
    %v80 = vadd.f32 %v78, 1e-05
    %v81 = vrsqrt.pop %v79
    %v82 = vrsqrt.pop %v80
    %v83 = vmul.f32 %v67, %v81
    %v84 = vmul.f32 %v68, %v82
    %v85 = vlaneseq
    %v86 = vshrl.u32 %v85, 7
    %v87 = vsub.s32 0, %v86
    %v88 = vrot.slane %v55, %v87
    %v89 = vmul.f32 %v83, %v88
    %v90 = vmul.f32 %v84, %v88
    %v91 = vlaneseq
    %v92 = vshrl.u32 %v91, 7
    %v93 = vsub.s32 1, %v92
    %v94 = vrot.slane %v55, %v93
    %v95 = vadd.f32 %v89, %v94
    %v96 = vadd.f32 %v90, %v94
    %v97 = vpack.c.bf16 %v96, %v95
    %v98 = vld [vmem:[%s2] sm:$0xf]
    %v99 = vld [vmem:[%s2 + $0x4] sm:$0xf]
    %v100 = vld [vmem:[%s2 + $0x8] sm:$0xf]
    %v101 = vld [vmem:[%s2 + $0xc] sm:$0xf]
    %v102 = vlaneseq
    %v103 = vshrl.u32 %v102, 7
    %v104 = vsub.s32 0, %v103
    %v105 = vrot.slane %v56, %v104
    %v110 = vunpack.c.l.b16 %v98
    %v111 = vunpack.c.l.b16 %v99
    %v112 = vunpack.c.l.b16 %v100
    %v113 = vunpack.c.l.b16 %v101
    %v114 = vpack.c.b16 %v111, %v110
    %v115 = vpack.c.b16 %v113, %v112
    %v119 = vsel %vm57, %v97, 0
    %121 = vmatprep.subr.bf16.mxu0 0
    %122 = vmatpush1.bf16.msra.mxu0 0
    %123 = vmatprep.subr.bf16.mxu0 0
    %124 = vmatpush1.bf16.msra.mxu0 0
    %125 = vmatprep.subr.bf16.mxu0 0
    %126 = vmatpush1.bf16.msra.mxu0 0
    %127 = vmatprep.subr.bf16.mxu0 0
    %128 = vmatpush1.bf16.msra.mxu0 0
    %129 = vmatprep.subr.bf16.mxu0 0
    %130 = vmatpush1.bf16.msra.mxu0 0
    %131 = vmatprep.subr.bf16.mxu0 0
    %132 = vmatpush1.bf16.msra.mxu0 0
    %133 = vmatprep.subr.bf16.mxu0 0
    %134 = vmatpush1.bf16.msra.mxu0 %v115
    %135 = vmatprep.subr.bf16.mxu0 0
    %136 = vmatpush1.bf16.msra.mxu0 %v114
    %137 = vmatprep.subr.bf16.mxu0 0
    %138 = vmatpush2.bf16.msra.mxu0 0
    %139 = vmatprep.subr.bf16.mxu0 0
    %140 = vmatpush2.bf16.msra.mxu0 0
    %141 = vmatprep.subr.bf16.mxu0 0
    %142 = vmatpush2.bf16.msra.mxu0 0
    %143 = vmatprep.subr.bf16.mxu0 0
    %144 = vmatpush2.bf16.msra.mxu0 0
    %145 = vmatprep.subr.bf16.mxu0 0
    %146 = vmatpush2.bf16.msra.mxu0 0
    %147 = vmatprep.subr.bf16.mxu0 0
    %148 = vmatpush2.bf16.msra.mxu0 0
    %149 = vmatprep.subr.bf16.mxu0 0
    %150 = vmatpush2.bf16.msra.mxu0 0
    %151 = vmatprep.subr.bf16.mxu0 0
    %152 = vmatpush2.bf16.msra.mxu0 0
    %153 = vmatprep.mubr.bf16.mxu0 0
    %154 = vmatmul.mubr.bf16.gmra.mxu0 %v119
    %v155 = vpop.f32.mrf.mxu0
    %v156 = vadd.f32 %v105, %v155
    %v157 = vpop.f32.mrf.mxu0
    %v158 = vpop.f32.mrf.mxu0
    %v159 = vadd.f32 %v105, %v158
    %v160 = vpop.f32.mrf.mxu0
    %161 = vdwg.mxu0
    %v162 = vpack.c.bf16 %v156, %v156
    %v163 = vpack.c.bf16 %v159, %v159
    %165 = vrot.lane.b32.xlu0 %v162, 120
    %v166 = vpop.permute.xlu0 %165
    %vm167 = vcmask 64512
    %v169 = vsel %vm167, %v162, 0
    %v172 = vsel %vm167, %v166, 0
    %174 = vmatprep.subr.bf16.mxu0 0
    %175 = vmatpush1.bf16.xpose.msra.mxu0 0
    %176 = vmatprep.subr.bf16.mxu0 0
    %177 = vmatpush1.bf16.xpose.msra.mxu0 0
    %178 = vmatprep.subr.bf16.mxu0 0
    %179 = vmatpush1.bf16.xpose.msra.mxu0 0
    %180 = vmatprep.subr.bf16.mxu0 0
    %181 = vmatpush1.bf16.xpose.msra.mxu0 0
    %182 = vmatprep.subr.bf16.mxu0 0
    %183 = vmatpush1.bf16.xpose.msra.mxu0 0
    %184 = vmatprep.subr.bf16.mxu0 0
    %185 = vmatpush1.bf16.xpose.msra.mxu0 0
    %186 = vmatprep.subr.bf16.mxu0 0
    %187 = vmatpush1.bf16.xpose.msra.mxu0 0
    %188 = vmatprep.subr.bf16.mxu0 0
    %189 = vmatpush1.bf16.xpose.msra.mxu0 %v172
    %190 = vmatprep.subr.bf16.mxu0 0
    %191 = vmatpush2.bf16.xpose.msra.mxu0 0
    %192 = vmatprep.subr.bf16.mxu0 0
    %193 = vmatpush2.bf16.xpose.msra.mxu0 0
    %194 = vmatprep.subr.bf16.mxu0 0
    %195 = vmatpush2.bf16.xpose.msra.mxu0 0
    %196 = vmatprep.subr.bf16.mxu0 0
    %197 = vmatpush2.bf16.xpose.msra.mxu0 0
    %198 = vmatprep.subr.bf16.mxu0 0
    %199 = vmatpush2.bf16.xpose.msra.mxu0 0
    %200 = vmatprep.subr.bf16.mxu0 0
    %201 = vmatpush2.bf16.xpose.msra.mxu0 0
    %202 = vmatprep.subr.bf16.mxu0 0
    %203 = vmatpush2.bf16.xpose.msra.mxu0 0
    %204 = vmatprep.subr.bf16.mxu0 0
    %205 = vmatpush2.bf16.xpose.msra.mxu0 0
    %206 = vmatprep.mubr.bf16.mxu0 0
    %207 = vmatmul.mubr.bf16.gmra.mxu0 %v169
    %v208 = vpop.f32.mrf.mxu0
    %v209 = vadd.f32 0.0, %v208
    %v210 = vpop.f32.mrf.mxu0
    %v211 = vpop.f32.mrf.mxu0
    %v212 = vpop.f32.mrf.mxu0
    %213 = vdwg.mxu0
    %215 = vrot.lane.b32.xlu0 %v163, 120
    %v216 = vpop.permute.xlu0 %215
    %v218 = vsel %vm167, %v163, 0
    %v221 = vsel %vm167, %v216, 0
    %223 = vmatprep.subr.bf16.mxu0 0
    %224 = vmatpush1.bf16.xpose.msra.mxu0 0
    %225 = vmatprep.subr.bf16.mxu0 0
    %226 = vmatpush1.bf16.xpose.msra.mxu0 0
    %227 = vmatprep.subr.bf16.mxu0 0
    %228 = vmatpush1.bf16.xpose.msra.mxu0 0
    %229 = vmatprep.subr.bf16.mxu0 0
    %230 = vmatpush1.bf16.xpose.msra.mxu0 0
    %231 = vmatprep.subr.bf16.mxu0 0
    %232 = vmatpush1.bf16.xpose.msra.mxu0 0
    %233 = vmatprep.subr.bf16.mxu0 0
    %234 = vmatpush1.bf16.xpose.msra.mxu0 0
    %235 = vmatprep.subr.bf16.mxu0 0
    %236 = vmatpush1.bf16.xpose.msra.mxu0 0
    %237 = vmatprep.subr.bf16.mxu0 0
    %238 = vmatpush1.bf16.xpose.msra.mxu0 %v221
    %239 = vmatprep.subr.bf16.mxu0 0
    %240 = vmatpush2.bf16.xpose.msra.mxu0 0
    %241 = vmatprep.subr.bf16.mxu0 0
    %242 = vmatpush2.bf16.xpose.msra.mxu0 0
    %243 = vmatprep.subr.bf16.mxu0 0
    %244 = vmatpush2.bf16.xpose.msra.mxu0 0
    %245 = vmatprep.subr.bf16.mxu0 0
    %246 = vmatpush2.bf16.xpose.msra.mxu0 0
    %247 = vmatprep.subr.bf16.mxu0 0
    %248 = vmatpush2.bf16.xpose.msra.mxu0 0
    %249 = vmatprep.subr.bf16.mxu0 0
    %250 = vmatpush2.bf16.xpose.msra.mxu0 0
    %251 = vmatprep.subr.bf16.mxu0 0
    %252 = vmatpush2.bf16.xpose.msra.mxu0 0
    %253 = vmatprep.subr.bf16.mxu0 0
    %254 = vmatpush2.bf16.xpose.msra.mxu0 0
    %255 = vmatprep.mubr.bf16.mxu0 0
    %256 = vmatmul.mubr.bf16.gmra.mxu0 %v218
    %v257 = vpop.f32.mrf.mxu0
    %v258 = vadd.f32 0.0, %v257
    %v259 = vpop.f32.mrf.mxu0
    %v260 = vpop.f32.mrf.mxu0
    %v261 = vpop.f32.mrf.mxu0
    %262 = vdwg.mxu0
    %v263 = vmul.f32 %v209, 0.17677669
    %v264 = vmul.f32 %v258, 0.17677669
    %v265 = vsel %vm167, %v263, -inf
    %266 = vmax.xlane.f32.xlu0 %v265
    %v267 = vpop.xlane.xlu0 %266
    %v268 = vsel %vm167, %v264, -inf
    %269 = vmax.xlane.f32.xlu0 %v268
    %v270 = vpop.xlane.xlu0 %269
    %v271 = vsub.f32 %v263, %v267
    %v272 = vsub.f32 %v264, %v270
    %v273 = vmul.f32 %v271, 1.442695
    %v274 = vpow.pop %v273
    %v275 = vmul.f32 %v272, 1.442695
    %v276 = vpow.pop %v275
    %v277 = vsel %vm167, %v274, 0.0
    %278 = vadd.xlane.f32.xlu0 %v277
    %v279 = vpop.xlane.xlu0 %278
    %v280 = vsel %vm167, %v276, 0.0
    %281 = vadd.xlane.f32.xlu0 %v280
    %v282 = vpop.xlane.xlu0 %281
    %v283 = vrcp.pop %v279
    %v284 = vrcp.pop %v282
    %v285 = vmul.f32 %v274, %v283
    %v286 = vmul.f32 %v276, %v284
    %v287 = vpack.c.bf16 %v285, %v285
    %v288 = vpack.c.bf16 %v286, %v286
    %289 = vrot.lane.b32.xlu0 %v162, 112
    %v290 = vpop.permute.xlu0 %289
    %v292 = vsel %vm167, %v287, 0
    %vm294 = vcmask 1043456
    %v296 = vsel %vm294, %v290, 0
    %298 = vmatprep.subr.bf16.mxu0 0
    %299 = vmatpush1.bf16.msra.mxu0 0
    %300 = vmatprep.subr.bf16.mxu0 0
    %301 = vmatpush1.bf16.msra.mxu0 0
    %302 = vmatprep.subr.bf16.mxu0 0
    %303 = vmatpush1.bf16.msra.mxu0 0
    %304 = vmatprep.subr.bf16.mxu0 0
    %305 = vmatpush1.bf16.msra.mxu0 0
    %306 = vmatprep.subr.bf16.mxu0 0
    %307 = vmatpush1.bf16.msra.mxu0 0
    %308 = vmatprep.subr.bf16.mxu0 0
    %309 = vmatpush1.bf16.msra.mxu0 0
    %310 = vmatprep.subr.bf16.mxu0 0
    %311 = vmatpush1.bf16.msra.mxu0 0
    %312 = vmatprep.subr.bf16.mxu0 0
    %313 = vmatpush1.bf16.msra.mxu0 %v296
    %314 = vmatprep.subr.bf16.mxu0 0
    %315 = vmatpush2.bf16.msra.mxu0 0
    %316 = vmatprep.subr.bf16.mxu0 0
    %317 = vmatpush2.bf16.msra.mxu0 0
    %318 = vmatprep.subr.bf16.mxu0 0
    %319 = vmatpush2.bf16.msra.mxu0 0
    %320 = vmatprep.subr.bf16.mxu0 0
    %321 = vmatpush2.bf16.msra.mxu0 0
    %322 = vmatprep.subr.bf16.mxu0 0
    %323 = vmatpush2.bf16.msra.mxu0 0
    %324 = vmatprep.subr.bf16.mxu0 0
    %325 = vmatpush2.bf16.msra.mxu0 0
    %326 = vmatprep.subr.bf16.mxu0 0
    %327 = vmatpush2.bf16.msra.mxu0 0
    %328 = vmatprep.subr.bf16.mxu0 0
    %329 = vmatpush2.bf16.msra.mxu0 0
    %330 = vmatprep.mubr.bf16.mxu0 0
    %331 = vmatmul.mubr.bf16.gmra.mxu0 %v292
    %v332 = vpop.f32.mrf.mxu0
    %v333 = vadd.f32 0.0, %v332
    %v334 = vpop.f32.mrf.mxu0
    %v335 = vpop.f32.mrf.mxu0
    %v336 = vpop.f32.mrf.mxu0
    %337 = vdwg.mxu0
    %338 = vrot.lane.b32.xlu0 %v163, 112
    %v339 = vpop.permute.xlu0 %338
    %v341 = vsel %vm167, %v288, 0
    %v344 = vsel %vm294, %v339, 0
    %346 = vmatprep.subr.bf16.mxu0 0
    %347 = vmatpush1.bf16.msra.mxu0 0
    %348 = vmatprep.subr.bf16.mxu0 0
    %349 = vmatpush1.bf16.msra.mxu0 0
    %350 = vmatprep.subr.bf16.mxu0 0
    %351 = vmatpush1.bf16.msra.mxu0 0
    %352 = vmatprep.subr.bf16.mxu0 0
    %353 = vmatpush1.bf16.msra.mxu0 0
    %354 = vmatprep.subr.bf16.mxu0 0
    %355 = vmatpush1.bf16.msra.mxu0 0
    %356 = vmatprep.subr.bf16.mxu0 0
    %357 = vmatpush1.bf16.msra.mxu0 0
    %358 = vmatprep.subr.bf16.mxu0 0
    %359 = vmatpush1.bf16.msra.mxu0 0
    %360 = vmatprep.subr.bf16.mxu0 0
    %361 = vmatpush1.bf16.msra.mxu0 %v344
    %362 = vmatprep.subr.bf16.mxu0 0
    %363 = vmatpush2.bf16.msra.mxu0 0
    %364 = vmatprep.subr.bf16.mxu0 0
    %365 = vmatpush2.bf16.msra.mxu0 0
    %366 = vmatprep.subr.bf16.mxu0 0
    %367 = vmatpush2.bf16.msra.mxu0 0
    %368 = vmatprep.subr.bf16.mxu0 0
    %369 = vmatpush2.bf16.msra.mxu0 0
    %370 = vmatprep.subr.bf16.mxu0 0
    %371 = vmatpush2.bf16.msra.mxu0 0
    %372 = vmatprep.subr.bf16.mxu0 0
    %373 = vmatpush2.bf16.msra.mxu0 0
    %374 = vmatprep.subr.bf16.mxu0 0
    %375 = vmatpush2.bf16.msra.mxu0 0
    %376 = vmatprep.subr.bf16.mxu0 0
    %377 = vmatpush2.bf16.msra.mxu0 0
    %378 = vmatprep.mubr.bf16.mxu0 0
    %379 = vmatmul.mubr.bf16.gmra.mxu0 %v341
    %v380 = vpop.f32.mrf.mxu0
    %v381 = vadd.f32 0.0, %v380
    %v382 = vpop.f32.mrf.mxu0
    %v383 = vpop.f32.mrf.mxu0
    %v384 = vpop.f32.mrf.mxu0
    %385 = vdwg.mxu0
    %v386 = vpack.c.bf16 %v381, %v333
    %v387 = vld [vmem:[#allocation2] sm:$0xf]
    %388 = vrot.lane.b32.xlu0 %v162, 104
    %v389 = vpop.permute.xlu0 %388
    %390 = vrot.lane.b32.xlu0 %v162, 96
    %v391 = vpop.permute.xlu0 %390
    %v393 = vsel %vm167, %v389, 0
    %v396 = vsel %vm167, %v391, 0
    %398 = vmatprep.subr.bf16.mxu0 0
    %399 = vmatpush1.bf16.xpose.msra.mxu0 0
    %400 = vmatprep.subr.bf16.mxu0 0
    %401 = vmatpush1.bf16.xpose.msra.mxu0 0
    %402 = vmatprep.subr.bf16.mxu0 0
    %403 = vmatpush1.bf16.xpose.msra.mxu0 0
    %404 = vmatprep.subr.bf16.mxu0 0
    %405 = vmatpush1.bf16.xpose.msra.mxu0 0
    %406 = vmatprep.subr.bf16.mxu0 0
    %407 = vmatpush1.bf16.xpose.msra.mxu0 0
    %408 = vmatprep.subr.bf16.mxu0 0
    %409 = vmatpush1.bf16.xpose.msra.mxu0 0
    %410 = vmatprep.subr.bf16.mxu0 0
    %411 = vmatpush1.bf16.xpose.msra.mxu0 0
    %412 = vmatprep.subr.bf16.mxu0 0
    %413 = vmatpush1.bf16.xpose.msra.mxu0 %v396
    %414 = vmatprep.subr.bf16.mxu0 0
    %415 = vmatpush2.bf16.xpose.msra.mxu0 0
    %416 = vmatprep.subr.bf16.mxu0 0
    %417 = vmatpush2.bf16.xpose.msra.mxu0 0
    %418 = vmatprep.subr.bf16.mxu0 0
    %419 = vmatpush2.bf16.xpose.msra.mxu0 0
    %420 = vmatprep.subr.bf16.mxu0 0
    %421 = vmatpush2.bf16.xpose.msra.mxu0 0
    %422 = vmatprep.subr.bf16.mxu0 0
    %423 = vmatpush2.bf16.xpose.msra.mxu0 0
    %424 = vmatprep.subr.bf16.mxu0 0
    %425 = vmatpush2.bf16.xpose.msra.mxu0 0
    %426 = vmatprep.subr.bf16.mxu0 0
    %427 = vmatpush2.bf16.xpose.msra.mxu0 0
    %428 = vmatprep.subr.bf16.mxu0 0
    %429 = vmatpush2.bf16.xpose.msra.mxu0 0
    %430 = vmatprep.mubr.bf16.mxu0 0
    %431 = vmatmul.mubr.bf16.gmra.mxu0 %v393
    %v432 = vpop.f32.mrf.mxu0
    %v433 = vadd.f32 0.0, %v432
    %v434 = vpop.f32.mrf.mxu0
    %v435 = vpop.f32.mrf.mxu0
    %v436 = vpop.f32.mrf.mxu0
    %437 = vdwg.mxu0
    %438 = vrot.lane.b32.xlu0 %v163, 104
    %v439 = vpop.permute.xlu0 %438
    %440 = vrot.lane.b32.xlu0 %v163, 96
    %v441 = vpop.permute.xlu0 %440
    %v443 = vsel %vm167, %v439, 0
    %v446 = vsel %vm167, %v441, 0
    %448 = vmatprep.subr.bf16.mxu0 0
    %449 = vmatpush1.bf16.xpose.msra.mxu0 0
    %450 = vmatprep.subr.bf16.mxu0 0
    %451 = vmatpush1.bf16.xpose.msra.mxu0 0
    %452 = vmatprep.subr.bf16.mxu0 0
    %453 = vmatpush1.bf16.xpose.msra.mxu0 0
    %454 = vmatprep.subr.bf16.mxu0 0
    %455 = vmatpush1.bf16.xpose.msra.mxu0 0
    %456 = vmatprep.subr.bf16.mxu0 0
    %457 = vmatpush1.bf16.xpose.msra.mxu0 0
    %458 = vmatprep.subr.bf16.mxu0 0
    %459 = vmatpush1.bf16.xpose.msra.mxu0 0
    %460 = vmatprep.subr.bf16.mxu0 0
    %461 = vmatpush1.bf16.xpose.msra.mxu0 0
    %462 = vmatprep.subr.bf16.mxu0 0
    %463 = vmatpush1.bf16.xpose.msra.mxu0 %v446
    %464 = vmatprep.subr.bf16.mxu0 0
    %465 = vmatpush2.bf16.xpose.msra.mxu0 0
    %466 = vmatprep.subr.bf16.mxu0 0
    %467 = vmatpush2.bf16.xpose.msra.mxu0 0
    %468 = vmatprep.subr.bf16.mxu0 0
    %469 = vmatpush2.bf16.xpose.msra.mxu0 0
    %470 = vmatprep.subr.bf16.mxu0 0
    %471 = vmatpush2.bf16.xpose.msra.mxu0 0
    %472 = vmatprep.subr.bf16.mxu0 0
    %473 = vmatpush2.bf16.xpose.msra.mxu0 0
    %474 = vmatprep.subr.bf16.mxu0 0
    %475 = vmatpush2.bf16.xpose.msra.mxu0 0
    %476 = vmatprep.subr.bf16.mxu0 0
    %477 = vmatpush2.bf16.xpose.msra.mxu0 0
    %478 = vmatprep.subr.bf16.mxu0 0
    %479 = vmatpush2.bf16.xpose.msra.mxu0 0
    %480 = vmatprep.mubr.bf16.mxu0 0
    %481 = vmatmul.mubr.bf16.gmra.mxu0 %v443
    %v482 = vpop.f32.mrf.mxu0
    %v483 = vadd.f32 0.0, %v482
    %v484 = vpop.f32.mrf.mxu0
    %v485 = vpop.f32.mrf.mxu0
    %v486 = vpop.f32.mrf.mxu0
    %487 = vdwg.mxu0
    %v488 = vmul.f32 %v433, 0.17677669
    %v489 = vmul.f32 %v483, 0.17677669
    %v490 = vsel %vm167, %v488, -inf
    %491 = vmax.xlane.f32.xlu0 %v490
    %v492 = vpop.xlane.xlu0 %491
    %v493 = vsel %vm167, %v489, -inf
    %494 = vmax.xlane.f32.xlu0 %v493
    %v495 = vpop.xlane.xlu0 %494
    %v496 = vsub.f32 %v488, %v492
    %v497 = vsub.f32 %v489, %v495
    %v498 = vmul.f32 %v496, 1.442695
    %v499 = vpow.pop %v498
    %v500 = vmul.f32 %v497, 1.442695
    %v501 = vpow.pop %v500
    %v502 = vsel %vm167, %v499, 0.0
    %503 = vadd.xlane.f32.xlu0 %v502
    %v504 = vpop.xlane.xlu0 %503
    %v505 = vsel %vm167, %v501, 0.0
    %506 = vadd.xlane.f32.xlu0 %v505
    %v507 = vpop.xlane.xlu0 %506
    %v508 = vrcp.pop %v504
    %v509 = vrcp.pop %v507
    %v510 = vmul.f32 %v499, %v508
    %v511 = vmul.f32 %v501, %v509
    %v512 = vpack.c.bf16 %v510, %v510
    %v513 = vpack.c.bf16 %v511, %v511
    %514 = vrot.lane.b32.xlu0 %v162, 88
    %v515 = vpop.permute.xlu0 %514
    %v517 = vsel %vm167, %v512, 0
    %v520 = vsel %vm294, %v515, 0
    %522 = vmatprep.subr.bf16.mxu0 0
    %523 = vmatpush1.bf16.msra.mxu0 0
    %524 = vmatprep.subr.bf16.mxu0 0
    %525 = vmatpush1.bf16.msra.mxu0 0
    %526 = vmatprep.subr.bf16.mxu0 0
    %527 = vmatpush1.bf16.msra.mxu0 0
    %528 = vmatprep.subr.bf16.mxu0 0
    %529 = vmatpush1.bf16.msra.mxu0 0
    %530 = vmatprep.subr.bf16.mxu0 0
    %531 = vmatpush1.bf16.msra.mxu0 0
    %532 = vmatprep.subr.bf16.mxu0 0
    %533 = vmatpush1.bf16.msra.mxu0 0
    %534 = vmatprep.subr.bf16.mxu0 0
    %535 = vmatpush1.bf16.msra.mxu0 0
    %536 = vmatprep.subr.bf16.mxu0 0
    %537 = vmatpush1.bf16.msra.mxu0 %v520
    %538 = vmatprep.subr.bf16.mxu0 0
    %539 = vmatpush2.bf16.msra.mxu0 0
    %540 = vmatprep.subr.bf16.mxu0 0
    %541 = vmatpush2.bf16.msra.mxu0 0
    %542 = vmatprep.subr.bf16.mxu0 0
    %543 = vmatpush2.bf16.msra.mxu0 0
    %544 = vmatprep.subr.bf16.mxu0 0
    %545 = vmatpush2.bf16.msra.mxu0 0
    %546 = vmatprep.subr.bf16.mxu0 0
    %547 = vmatpush2.bf16.msra.mxu0 0
    %548 = vmatprep.subr.bf16.mxu0 0
    %549 = vmatpush2.bf16.msra.mxu0 0
    %550 = vmatprep.subr.bf16.mxu0 0
    %551 = vmatpush2.bf16.msra.mxu0 0
    %552 = vmatprep.subr.bf16.mxu0 0
    %553 = vmatpush2.bf16.msra.mxu0 0
    %554 = vmatprep.mubr.bf16.mxu0 0
    %555 = vmatmul.mubr.bf16.gmra.mxu0 %v517
    %v556 = vpop.f32.mrf.mxu0
    %v557 = vadd.f32 0.0, %v556
    %v558 = vpop.f32.mrf.mxu0
    %v559 = vpop.f32.mrf.mxu0
    %v560 = vpop.f32.mrf.mxu0
    %561 = vdwg.mxu0
    %562 = vrot.lane.b32.xlu0 %v163, 88
    %v563 = vpop.permute.xlu0 %562
    %v565 = vsel %vm167, %v513, 0
    %v568 = vsel %vm294, %v563, 0
    %570 = vmatprep.subr.bf16.mxu0 0
    %571 = vmatpush1.bf16.msra.mxu0 0
    %572 = vmatprep.subr.bf16.mxu0 0
    %573 = vmatpush1.bf16.msra.mxu0 0
    %574 = vmatprep.subr.bf16.mxu0 0
    %575 = vmatpush1.bf16.msra.mxu0 0
    %576 = vmatprep.subr.bf16.mxu0 0
    %577 = vmatpush1.bf16.msra.mxu0 0
    %578 = vmatprep.subr.bf16.mxu0 0
    %579 = vmatpush1.bf16.msra.mxu0 0
    %580 = vmatprep.subr.bf16.mxu0 0
    %581 = vmatpush1.bf16.msra.mxu0 0
    %582 = vmatprep.subr.bf16.mxu0 0
    %583 = vmatpush1.bf16.msra.mxu0 0
    %584 = vmatprep.subr.bf16.mxu0 0
    %585 = vmatpush1.bf16.msra.mxu0 %v568
    %586 = vmatprep.subr.bf16.mxu0 0
    %587 = vmatpush2.bf16.msra.mxu0 0
    %588 = vmatprep.subr.bf16.mxu0 0
    %589 = vmatpush2.bf16.msra.mxu0 0
    %590 = vmatprep.subr.bf16.mxu0 0
    %591 = vmatpush2.bf16.msra.mxu0 0
    %592 = vmatprep.subr.bf16.mxu0 0
    %593 = vmatpush2.bf16.msra.mxu0 0
    %594 = vmatprep.subr.bf16.mxu0 0
    %595 = vmatpush2.bf16.msra.mxu0 0
    %596 = vmatprep.subr.bf16.mxu0 0
    %597 = vmatpush2.bf16.msra.mxu0 0
    %598 = vmatprep.subr.bf16.mxu0 0
    %599 = vmatpush2.bf16.msra.mxu0 0
    %600 = vmatprep.subr.bf16.mxu0 0
    %601 = vmatpush2.bf16.msra.mxu0 0
    %602 = vmatprep.mubr.bf16.mxu0 0
    %603 = vmatmul.mubr.bf16.gmra.mxu0 %v565
    %v604 = vpop.f32.mrf.mxu0
    %v605 = vadd.f32 0.0, %v604
    %v606 = vpop.f32.mrf.mxu0
    %v607 = vpop.f32.mrf.mxu0
    %v608 = vpop.f32.mrf.mxu0
    %609 = vdwg.mxu0
    %v610 = vpack.c.bf16 %v605, %v557
    %s611 = scalar_lea.vmem [#allocation2], 4
    %v612 = vld [vmem:[%s611] sm:$0xf]
    %v614 = vsel %vm167, %v610, 0
    %v617 = vsel %vm294, %v612, 0
    %619 = vmatprep.subr.bf16.mxu0 0
    %620 = vmatpush1.bf16.msra.mxu0 0
    %621 = vmatprep.subr.bf16.mxu0 0
    %622 = vmatpush1.bf16.msra.mxu0 0
    %623 = vmatprep.subr.bf16.mxu0 0
    %624 = vmatpush1.bf16.msra.mxu0 0
    %625 = vmatprep.subr.bf16.mxu0 0
    %626 = vmatpush1.bf16.msra.mxu0 0
    %627 = vmatprep.subr.bf16.mxu0 0
    %628 = vmatpush1.bf16.msra.mxu0 0
    %629 = vmatprep.subr.bf16.mxu0 0
    %630 = vmatpush1.bf16.msra.mxu0 0
    %631 = vmatprep.subr.bf16.mxu0 0
    %632 = vmatpush1.bf16.msra.mxu0 0
    %633 = vmatprep.subr.bf16.mxu0 0
    %634 = vmatpush1.bf16.msra.mxu0 %v617
    %635 = vmatprep.subr.bf16.mxu0 0
    %636 = vmatpush2.bf16.msra.mxu0 0
    %637 = vmatprep.subr.bf16.mxu0 0
    %638 = vmatpush2.bf16.msra.mxu0 0
    %639 = vmatprep.subr.bf16.mxu0 0
    %640 = vmatpush2.bf16.msra.mxu0 0
    %641 = vmatprep.subr.bf16.mxu0 0
    %642 = vmatpush2.bf16.msra.mxu0 0
    %643 = vmatprep.subr.bf16.mxu0 0
    %644 = vmatpush2.bf16.msra.mxu0 0
    %645 = vmatprep.subr.bf16.mxu0 0
    %646 = vmatpush2.bf16.msra.mxu0 0
    %647 = vmatprep.subr.bf16.mxu0 0
    %648 = vmatpush2.bf16.msra.mxu0 0
    %649 = vmatprep.subr.bf16.mxu0 0
    %650 = vmatpush2.bf16.msra.mxu0 0
    %651 = vmatprep.mubr.bf16.mxu0 0
    %652 = vmatmul.mubr.bf16.gmra.mxu0 %v614
    %v653 = vpop.f32.mrf.mxu0
    %v654 = vadd.f32 0.0, %v653
    %v655 = vpop.f32.mrf.mxu0
    %v656 = vpop.f32.mrf.mxu0
    %v657 = vadd.f32 0.0, %v656
    %v658 = vpop.f32.mrf.mxu0
    %659 = vdwg.mxu0
    %v661 = vsel %vm167, %v386, 0
    %v664 = vsel %vm294, %v387, 0
    %666 = vmatprep.subr.bf16.mxu0 0
    %667 = vmatpush1.bf16.msra.mxu0 0
    %668 = vmatprep.subr.bf16.mxu0 0
    %669 = vmatpush1.bf16.msra.mxu0 0
    %670 = vmatprep.subr.bf16.mxu0 0
    %671 = vmatpush1.bf16.msra.mxu0 0
    %672 = vmatprep.subr.bf16.mxu0 0
    %673 = vmatpush1.bf16.msra.mxu0 0
    %674 = vmatprep.subr.bf16.mxu0 0
    %675 = vmatpush1.bf16.msra.mxu0 0
    %676 = vmatprep.subr.bf16.mxu0 0
    %677 = vmatpush1.bf16.msra.mxu0 0
    %678 = vmatprep.subr.bf16.mxu0 0
    %679 = vmatpush1.bf16.msra.mxu0 0
    %680 = vmatprep.subr.bf16.mxu0 0
    %681 = vmatpush1.bf16.msra.mxu0 %v664
    %682 = vmatprep.subr.bf16.mxu0 0
    %683 = vmatpush2.bf16.msra.mxu0 0
    %684 = vmatprep.subr.bf16.mxu0 0
    %685 = vmatpush2.bf16.msra.mxu0 0
    %686 = vmatprep.subr.bf16.mxu0 0
    %687 = vmatpush2.bf16.msra.mxu0 0
    %688 = vmatprep.subr.bf16.mxu0 0
    %689 = vmatpush2.bf16.msra.mxu0 0
    %690 = vmatprep.subr.bf16.mxu0 0
    %691 = vmatpush2.bf16.msra.mxu0 0
    %692 = vmatprep.subr.bf16.mxu0 0
    %693 = vmatpush2.bf16.msra.mxu0 0
    %694 = vmatprep.subr.bf16.mxu0 0
    %695 = vmatpush2.bf16.msra.mxu0 0
    %696 = vmatprep.subr.bf16.mxu0 0
    %697 = vmatpush2.bf16.msra.mxu0 0
    %698 = vmatprep.mubr.bf16.mxu0 0
    %699 = vmatmul.mubr.bf16.gmra.mxu0 %v661
    %v700 = vpop.f32.mrf.mxu0
    %v701 = vadd.f32 %v654, %v700
    %v702 = vpop.f32.mrf.mxu0
    %v703 = vpop.f32.mrf.mxu0
    %v704 = vadd.f32 %v657, %v703
    %v705 = vpop.f32.mrf.mxu0
    %706 = vdwg.mxu0
    %707 = vrot.lane.b32.xlu0 %v162, 80
    %v708 = vpop.permute.xlu0 %707
    %709 = vrot.lane.b32.xlu0 %v162, 72
    %v710 = vpop.permute.xlu0 %709
    %v712 = vsel %vm167, %v708, 0
    %v715 = vsel %vm167, %v710, 0
    %717 = vmatprep.subr.bf16.mxu0 0
    %718 = vmatpush1.bf16.xpose.msra.mxu0 0
    %719 = vmatprep.subr.bf16.mxu0 0
    %720 = vmatpush1.bf16.xpose.msra.mxu0 0
    %721 = vmatprep.subr.bf16.mxu0 0
    %722 = vmatpush1.bf16.xpose.msra.mxu0 0
    %723 = vmatprep.subr.bf16.mxu0 0
    %724 = vmatpush1.bf16.xpose.msra.mxu0 0
    %725 = vmatprep.subr.bf16.mxu0 0
    %726 = vmatpush1.bf16.xpose.msra.mxu0 0
    %727 = vmatprep.subr.bf16.mxu0 0
    %728 = vmatpush1.bf16.xpose.msra.mxu0 0
    %729 = vmatprep.subr.bf16.mxu0 0
    %730 = vmatpush1.bf16.xpose.msra.mxu0 0
    %731 = vmatprep.subr.bf16.mxu0 0
    %732 = vmatpush1.bf16.xpose.msra.mxu0 %v715
    %733 = vmatprep.subr.bf16.mxu0 0
    %734 = vmatpush2.bf16.xpose.msra.mxu0 0
    %735 = vmatprep.subr.bf16.mxu0 0
    %736 = vmatpush2.bf16.xpose.msra.mxu0 0
    %737 = vmatprep.subr.bf16.mxu0 0
    %738 = vmatpush2.bf16.xpose.msra.mxu0 0
    %739 = vmatprep.subr.bf16.mxu0 0
    %740 = vmatpush2.bf16.xpose.msra.mxu0 0
    %741 = vmatprep.subr.bf16.mxu0 0
    %742 = vmatpush2.bf16.xpose.msra.mxu0 0
    %743 = vmatprep.subr.bf16.mxu0 0
    %744 = vmatpush2.bf16.xpose.msra.mxu0 0
    %745 = vmatprep.subr.bf16.mxu0 0
    %746 = vmatpush2.bf16.xpose.msra.mxu0 0
    %747 = vmatprep.subr.bf16.mxu0 0
    %748 = vmatpush2.bf16.xpose.msra.mxu0 0
    %749 = vmatprep.mubr.bf16.mxu0 0
    %750 = vmatmul.mubr.bf16.gmra.mxu0 %v712
    %v751 = vpop.f32.mrf.mxu0
    %v752 = vadd.f32 0.0, %v751
    %v753 = vpop.f32.mrf.mxu0
    %v754 = vpop.f32.mrf.mxu0
    %v755 = vpop.f32.mrf.mxu0
    %756 = vdwg.mxu0
    %757 = vrot.lane.b32.xlu0 %v163, 80
    %v758 = vpop.permute.xlu0 %757
    %759 = vrot.lane.b32.xlu0 %v163, 72
    %v760 = vpop.permute.xlu0 %759
    %v762 = vsel %vm167, %v758, 0
    %v765 = vsel %vm167, %v760, 0
    %767 = vmatprep.subr.bf16.mxu0 0
    %768 = vmatpush1.bf16.xpose.msra.mxu0 0
    %769 = vmatprep.subr.bf16.mxu0 0
    %770 = vmatpush1.bf16.xpose.msra.mxu0 0
    %771 = vmatprep.subr.bf16.mxu0 0
    %772 = vmatpush1.bf16.xpose.msra.mxu0 0
    %773 = vmatprep.subr.bf16.mxu0 0
    %774 = vmatpush1.bf16.xpose.msra.mxu0 0
    %775 = vmatprep.subr.bf16.mxu0 0
    %776 = vmatpush1.bf16.xpose.msra.mxu0 0
    %777 = vmatprep.subr.bf16.mxu0 0
    %778 = vmatpush1.bf16.xpose.msra.mxu0 0
    %779 = vmatprep.subr.bf16.mxu0 0
    %780 = vmatpush1.bf16.xpose.msra.mxu0 0
    %781 = vmatprep.subr.bf16.mxu0 0
    %782 = vmatpush1.bf16.xpose.msra.mxu0 %v765
    %783 = vmatprep.subr.bf16.mxu0 0
    %784 = vmatpush2.bf16.xpose.msra.mxu0 0
    %785 = vmatprep.subr.bf16.mxu0 0
    %786 = vmatpush2.bf16.xpose.msra.mxu0 0
    %787 = vmatprep.subr.bf16.mxu0 0
    %788 = vmatpush2.bf16.xpose.msra.mxu0 0
    %789 = vmatprep.subr.bf16.mxu0 0
    %790 = vmatpush2.bf16.xpose.msra.mxu0 0
    %791 = vmatprep.subr.bf16.mxu0 0
    %792 = vmatpush2.bf16.xpose.msra.mxu0 0
    %793 = vmatprep.subr.bf16.mxu0 0
    %794 = vmatpush2.bf16.xpose.msra.mxu0 0
    %795 = vmatprep.subr.bf16.mxu0 0
    %796 = vmatpush2.bf16.xpose.msra.mxu0 0
    %797 = vmatprep.subr.bf16.mxu0 0
    %798 = vmatpush2.bf16.xpose.msra.mxu0 0
    %799 = vmatprep.mubr.bf16.mxu0 0
    %800 = vmatmul.mubr.bf16.gmra.mxu0 %v762
    %v801 = vpop.f32.mrf.mxu0
    %v802 = vadd.f32 0.0, %v801
    %v803 = vpop.f32.mrf.mxu0
    %v804 = vpop.f32.mrf.mxu0
    %v805 = vpop.f32.mrf.mxu0
    %806 = vdwg.mxu0
    %v807 = vmul.f32 %v752, 0.17677669
    %v808 = vmul.f32 %v802, 0.17677669
    %v809 = vsel %vm167, %v807, -inf
    %810 = vmax.xlane.f32.xlu0 %v809
    %v811 = vpop.xlane.xlu0 %810
    %v812 = vsel %vm167, %v808, -inf
    %813 = vmax.xlane.f32.xlu0 %v812
    %v814 = vpop.xlane.xlu0 %813
    %v815 = vsub.f32 %v807, %v811
    %v816 = vsub.f32 %v808, %v814
    %v817 = vmul.f32 %v815, 1.442695
    %v818 = vpow.pop %v817
    %v819 = vmul.f32 %v816, 1.442695
    %v820 = vpow.pop %v819
    %v821 = vsel %vm167, %v818, 0.0
    %822 = vadd.xlane.f32.xlu0 %v821
    %v823 = vpop.xlane.xlu0 %822
    %v824 = vsel %vm167, %v820, 0.0
    %825 = vadd.xlane.f32.xlu0 %v824
    %v826 = vpop.xlane.xlu0 %825
    %v827 = vrcp.pop %v823
    %v828 = vrcp.pop %v826
    %v829 = vmul.f32 %v818, %v827
    %v830 = vmul.f32 %v820, %v828
    %v831 = vpack.c.bf16 %v829, %v829
    %v832 = vpack.c.bf16 %v830, %v830
    %833 = vrot.lane.b32.xlu0 %v162, 64
    %v834 = vpop.permute.xlu0 %833
    %v836 = vsel %vm167, %v831, 0
    %v839 = vsel %vm294, %v834, 0
    %841 = vmatprep.subr.bf16.mxu0 0
    %842 = vmatpush1.bf16.msra.mxu0 0
    %843 = vmatprep.subr.bf16.mxu0 0
    %844 = vmatpush1.bf16.msra.mxu0 0
    %845 = vmatprep.subr.bf16.mxu0 0
    %846 = vmatpush1.bf16.msra.mxu0 0
    %847 = vmatprep.subr.bf16.mxu0 0
    %848 = vmatpush1.bf16.msra.mxu0 0
    %849 = vmatprep.subr.bf16.mxu0 0
    %850 = vmatpush1.bf16.msra.mxu0 0
    %851 = vmatprep.subr.bf16.mxu0 0
    %852 = vmatpush1.bf16.msra.mxu0 0
    %853 = vmatprep.subr.bf16.mxu0 0
    %854 = vmatpush1.bf16.msra.mxu0 0
    %855 = vmatprep.subr.bf16.mxu0 0
    %856 = vmatpush1.bf16.msra.mxu0 %v839
    %857 = vmatprep.subr.bf16.mxu0 0
    %858 = vmatpush2.bf16.msra.mxu0 0
    %859 = vmatprep.subr.bf16.mxu0 0
    %860 = vmatpush2.bf16.msra.mxu0 0
    %861 = vmatprep.subr.bf16.mxu0 0
    %862 = vmatpush2.bf16.msra.mxu0 0
    %863 = vmatprep.subr.bf16.mxu0 0
    %864 = vmatpush2.bf16.msra.mxu0 0
    %865 = vmatprep.subr.bf16.mxu0 0
    %866 = vmatpush2.bf16.msra.mxu0 0
    %867 = vmatprep.subr.bf16.mxu0 0
    %868 = vmatpush2.bf16.msra.mxu0 0
    %869 = vmatprep.subr.bf16.mxu0 0
    %870 = vmatpush2.bf16.msra.mxu0 0
    %871 = vmatprep.subr.bf16.mxu0 0
    %872 = vmatpush2.bf16.msra.mxu0 0
    %873 = vmatprep.mubr.bf16.mxu0 0
    %874 = vmatmul.mubr.bf16.gmra.mxu0 %v836
    %v875 = vpop.f32.mrf.mxu0
    %v876 = vadd.f32 0.0, %v875
    %v877 = vpop.f32.mrf.mxu0
    %v878 = vpop.f32.mrf.mxu0
    %v879 = vpop.f32.mrf.mxu0
    %880 = vdwg.mxu0
    %881 = vrot.lane.b32.xlu0 %v163, 64
    %v882 = vpop.permute.xlu0 %881
    %v884 = vsel %vm167, %v832, 0
    %v887 = vsel %vm294, %v882, 0
    %889 = vmatprep.subr.bf16.mxu0 0
    %890 = vmatpush1.bf16.msra.mxu0 0
    %891 = vmatprep.subr.bf16.mxu0 0
    %892 = vmatpush1.bf16.msra.mxu0 0
    %893 = vmatprep.subr.bf16.mxu0 0
    %894 = vmatpush1.bf16.msra.mxu0 0
    %895 = vmatprep.subr.bf16.mxu0 0
    %896 = vmatpush1.bf16.msra.mxu0 0
    %897 = vmatprep.subr.bf16.mxu0 0
    %898 = vmatpush1.bf16.msra.mxu0 0
    %899 = vmatprep.subr.bf16.mxu0 0
    %900 = vmatpush1.bf16.msra.mxu0 0
    %901 = vmatprep.subr.bf16.mxu0 0
    %902 = vmatpush1.bf16.msra.mxu0 0
    %903 = vmatprep.subr.bf16.mxu0 0
    %904 = vmatpush1.bf16.msra.mxu0 %v887
    %905 = vmatprep.subr.bf16.mxu0 0
    %906 = vmatpush2.bf16.msra.mxu0 0
    %907 = vmatprep.subr.bf16.mxu0 0
    %908 = vmatpush2.bf16.msra.mxu0 0
    %909 = vmatprep.subr.bf16.mxu0 0
    %910 = vmatpush2.bf16.msra.mxu0 0
    %911 = vmatprep.subr.bf16.mxu0 0
    %912 = vmatpush2.bf16.msra.mxu0 0
    %913 = vmatprep.subr.bf16.mxu0 0
    %914 = vmatpush2.bf16.msra.mxu0 0
    %915 = vmatprep.subr.bf16.mxu0 0
    %916 = vmatpush2.bf16.msra.mxu0 0
    %917 = vmatprep.subr.bf16.mxu0 0
    %918 = vmatpush2.bf16.msra.mxu0 0
    %919 = vmatprep.subr.bf16.mxu0 0
    %920 = vmatpush2.bf16.msra.mxu0 0
    %921 = vmatprep.mubr.bf16.mxu0 0
    %922 = vmatmul.mubr.bf16.gmra.mxu0 %v884
    %v923 = vpop.f32.mrf.mxu0
    %v924 = vadd.f32 0.0, %v923
    %v925 = vpop.f32.mrf.mxu0
    %v926 = vpop.f32.mrf.mxu0
    %v927 = vpop.f32.mrf.mxu0
    %928 = vdwg.mxu0
    %v929 = vpack.c.bf16 %v924, %v876
    %s930 = scalar_lea.vmem [#allocation2], 8
    %v931 = vld [vmem:[%s930] sm:$0xf]
    %v933 = vsel %vm167, %v929, 0
    %v936 = vsel %vm294, %v931, 0
    %938 = vmatprep.subr.bf16.mxu0 0
    %939 = vmatpush1.bf16.msra.mxu0 0
    %940 = vmatprep.subr.bf16.mxu0 0
    %941 = vmatpush1.bf16.msra.mxu0 0
    %942 = vmatprep.subr.bf16.mxu0 0
    %943 = vmatpush1.bf16.msra.mxu0 0
    %944 = vmatprep.subr.bf16.mxu0 0
    %945 = vmatpush1.bf16.msra.mxu0 0
    %946 = vmatprep.subr.bf16.mxu0 0
    %947 = vmatpush1.bf16.msra.mxu0 0
    %948 = vmatprep.subr.bf16.mxu0 0
    %949 = vmatpush1.bf16.msra.mxu0 0
    %950 = vmatprep.subr.bf16.mxu0 0
    %951 = vmatpush1.bf16.msra.mxu0 0
    %952 = vmatprep.subr.bf16.mxu0 0
    %953 = vmatpush1.bf16.msra.mxu0 %v936
    %954 = vmatprep.subr.bf16.mxu0 0
    %955 = vmatpush2.bf16.msra.mxu0 0
    %956 = vmatprep.subr.bf16.mxu0 0
    %957 = vmatpush2.bf16.msra.mxu0 0
    %958 = vmatprep.subr.bf16.mxu0 0
    %959 = vmatpush2.bf16.msra.mxu0 0
    %960 = vmatprep.subr.bf16.mxu0 0
    %961 = vmatpush2.bf16.msra.mxu0 0
    %962 = vmatprep.subr.bf16.mxu0 0
    %963 = vmatpush2.bf16.msra.mxu0 0
    %964 = vmatprep.subr.bf16.mxu0 0
    %965 = vmatpush2.bf16.msra.mxu0 0
    %966 = vmatprep.subr.bf16.mxu0 0
    %967 = vmatpush2.bf16.msra.mxu0 0
    %968 = vmatprep.subr.bf16.mxu0 0
    %969 = vmatpush2.bf16.msra.mxu0 0
    %970 = vmatprep.mubr.bf16.mxu0 0
    %971 = vmatmul.mubr.bf16.gmra.mxu0 %v933
    %v972 = vpop.f32.mrf.mxu0
    %v973 = vadd.f32 0.0, %v972
    %v974 = vpop.f32.mrf.mxu0
    %v975 = vpop.f32.mrf.mxu0
    %v976 = vadd.f32 0.0, %v975
    %v977 = vpop.f32.mrf.mxu0
    %978 = vdwg.mxu0
    %v979 = vadd.f32 %v701, %v973
    %v980 = vadd.f32 %v704, %v976
    %981 = vrot.lane.b32.xlu0 %v162, 56
    %v982 = vpop.permute.xlu0 %981
    %983 = vrot.lane.b32.xlu0 %v162, 48
    %v984 = vpop.permute.xlu0 %983
    %v986 = vsel %vm167, %v982, 0
    %v989 = vsel %vm167, %v984, 0
    %991 = vmatprep.subr.bf16.mxu0 0
    %992 = vmatpush1.bf16.xpose.msra.mxu0 0
    %993 = vmatprep.subr.bf16.mxu0 0
    %994 = vmatpush1.bf16.xpose.msra.mxu0 0
    %995 = vmatprep.subr.bf16.mxu0 0
    %996 = vmatpush1.bf16.xpose.msra.mxu0 0
    %997 = vmatprep.subr.bf16.mxu0 0
    %998 = vmatpush1.bf16.xpose.msra.mxu0 0
    %999 = vmatprep.subr.bf16.mxu0 0
    %1000 = vmatpush1.bf16.xpose.msra.mxu0 0
    %1001 = vmatprep.subr.bf16.mxu0 0
    %1002 = vmatpush1.bf16.xpose.msra.mxu0 0
    %1003 = vmatprep.subr.bf16.mxu0 0
    %1004 = vmatpush1.bf16.xpose.msra.mxu0 0
    %1005 = vmatprep.subr.bf16.mxu0 0
    %1006 = vmatpush1.bf16.xpose.msra.mxu0 %v989
    %1007 = vmatprep.subr.bf16.mxu0 0
    %1008 = vmatpush2.bf16.xpose.msra.mxu0 0
    %1009 = vmatprep.subr.bf16.mxu0 0
    %1010 = vmatpush2.bf16.xpose.msra.mxu0 0
    %1011 = vmatprep.subr.bf16.mxu0 0
    %1012 = vmatpush2.bf16.xpose.msra.mxu0 0
    %1013 = vmatprep.subr.bf16.mxu0 0
    %1014 = vmatpush2.bf16.xpose.msra.mxu0 0
    %1015 = vmatprep.subr.bf16.mxu0 0
    %1016 = vmatpush2.bf16.xpose.msra.mxu0 0
    %1017 = vmatprep.subr.bf16.mxu0 0
    %1018 = vmatpush2.bf16.xpose.msra.mxu0 0
    %1019 = vmatprep.subr.bf16.mxu0 0
    %1020 = vmatpush2.bf16.xpose.msra.mxu0 0
    %1021 = vmatprep.subr.bf16.mxu0 0
    %1022 = vmatpush2.bf16.xpose.msra.mxu0 0
    %1023 = vmatprep.mubr.bf16.mxu0 0
    %1024 = vmatmul.mubr.bf16.gmra.mxu0 %v986
    %v1025 = vpop.f32.mrf.mxu0
    %v1026 = vadd.f32 0.0, %v1025
    %v1027 = vpop.f32.mrf.mxu0
    %v1028 = vpop.f32.mrf.mxu0
    %v1029 = vpop.f32.mrf.mxu0
    %1030 = vdwg.mxu0
    %1031 = vrot.lane.b32.xlu0 %v163, 56
    %v1032 = vpop.permute.xlu0 %1031
    %1033 = vrot.lane.b32.xlu0 %v163, 48
    %v1034 = vpop.permute.xlu0 %1033
    %v1036 = vsel %vm167, %v1032, 0
    %v1039 = vsel %vm167, %v1034, 0
    %1041 = vmatprep.subr.bf16.mxu0 0
    %1042 = vmatpush1.bf16.xpose.msra.mxu0 0
    %1043 = vmatprep.subr.bf16.mxu0 0
    %1044 = vmatpush1.bf16.xpose.msra.mxu0 0
    %1045 = vmatprep.subr.bf16.mxu0 0
    %1046 = vmatpush1.bf16.xpose.msra.mxu0 0
    %1047 = vmatprep.subr.bf16.mxu0 0
    %1048 = vmatpush1.bf16.xpose.msra.mxu0 0
    %1049 = vmatprep.subr.bf16.mxu0 0
    %1050 = vmatpush1.bf16.xpose.msra.mxu0 0
    %1051 = vmatprep.subr.bf16.mxu0 0
    %1052 = vmatpush1.bf16.xpose.msra.mxu0 0
    %1053 = vmatprep.subr.bf16.mxu0 0
    %1054 = vmatpush1.bf16.xpose.msra.mxu0 0
    %1055 = vmatprep.subr.bf16.mxu0 0
    %1056 = vmatpush1.bf16.xpose.msra.mxu0 %v1039
    %1057 = vmatprep.subr.bf16.mxu0 0
    %1058 = vmatpush2.bf16.xpose.msra.mxu0 0
    %1059 = vmatprep.subr.bf16.mxu0 0
    %1060 = vmatpush2.bf16.xpose.msra.mxu0 0
    %1061 = vmatprep.subr.bf16.mxu0 0
    %1062 = vmatpush2.bf16.xpose.msra.mxu0 0
    %1063 = vmatprep.subr.bf16.mxu0 0
    %1064 = vmatpush2.bf16.xpose.msra.mxu0 0
    %1065 = vmatprep.subr.bf16.mxu0 0
    %1066 = vmatpush2.bf16.xpose.msra.mxu0 0
    %1067 = vmatprep.subr.bf16.mxu0 0
    %1068 = vmatpush2.bf16.xpose.msra.mxu0 0
    %1069 = vmatprep.subr.bf16.mxu0 0
    %1070 = vmatpush2.bf16.xpose.msra.mxu0 0
    %1071 = vmatprep.subr.bf16.mxu0 0
    %1072 = vmatpush2.bf16.xpose.msra.mxu0 0
    %1073 = vmatprep.mubr.bf16.mxu0 0
    %1074 = vmatmul.mubr.bf16.gmra.mxu0 %v1036
    %v1075 = vpop.f32.mrf.mxu0
    %v1076 = vadd.f32 0.0, %v1075
    %v1077 = vpop.f32.mrf.mxu0
    %v1078 = vpop.f32.mrf.mxu0
    %v1079 = vpop.f32.mrf.mxu0
    %1080 = vdwg.mxu0
    %v1081 = vmul.f32 %v1026, 0.17677669
    %v1082 = vmul.f32 %v1076, 0.17677669
    %v1083 = vsel %vm167, %v1081, -inf
    %1084 = vmax.xlane.f32.xlu0 %v1083
    %v1085 = vpop.xlane.xlu0 %1084
    %v1086 = vsel %vm167, %v1082, -inf
    %1087 = vmax.xlane.f32.xlu0 %v1086
    %v1088 = vpop.xlane.xlu0 %1087
    %v1089 = vsub.f32 %v1081, %v1085
    %v1090 = vsub.f32 %v1082, %v1088
    %v1091 = vmul.f32 %v1089, 1.442695
    %v1092 = vpow.pop %v1091
    %v1093 = vmul.f32 %v1090, 1.442695
    %v1094 = vpow.pop %v1093
    %v1095 = vsel %vm167, %v1092, 0.0
    %1096 = vadd.xlane.f32.xlu0 %v1095
    %v1097 = vpop.xlane.xlu0 %1096
    %v1098 = vsel %vm167, %v1094, 0.0
    %1099 = vadd.xlane.f32.xlu0 %v1098
    %v1100 = vpop.xlane.xlu0 %1099
    %v1101 = vrcp.pop %v1097
    %v1102 = vrcp.pop %v1100
    %v1103 = vmul.f32 %v1092, %v1101
    %v1104 = vmul.f32 %v1094, %v1102
    %v1105 = vpack.c.bf16 %v1103, %v1103
    %v1106 = vpack.c.bf16 %v1104, %v1104
    %1107 = vrot.lane.b32.xlu0 %v162, 40
    %v1108 = vpop.permute.xlu0 %1107
    %v1110 = vsel %vm167, %v1105, 0
    %v1113 = vsel %vm294, %v1108, 0
    %1115 = vmatprep.subr.bf16.mxu0 0
    %1116 = vmatpush1.bf16.msra.mxu0 0
    %1117 = vmatprep.subr.bf16.mxu0 0
    %1118 = vmatpush1.bf16.msra.mxu0 0
    %1119 = vmatprep.subr.bf16.mxu0 0
    %1120 = vmatpush1.bf16.msra.mxu0 0
    %1121 = vmatprep.subr.bf16.mxu0 0
    %1122 = vmatpush1.bf16.msra.mxu0 0
    %1123 = vmatprep.subr.bf16.mxu0 0
    %1124 = vmatpush1.bf16.msra.mxu0 0
    %1125 = vmatprep.subr.bf16.mxu0 0
    %1126 = vmatpush1.bf16.msra.mxu0 0
    %1127 = vmatprep.subr.bf16.mxu0 0
    %1128 = vmatpush1.bf16.msra.mxu0 0
    %1129 = vmatprep.subr.bf16.mxu0 0
    %1130 = vmatpush1.bf16.msra.mxu0 %v1113
    %1131 = vmatprep.subr.bf16.mxu0 0
    %1132 = vmatpush2.bf16.msra.mxu0 0
    %1133 = vmatprep.subr.bf16.mxu0 0
    %1134 = vmatpush2.bf16.msra.mxu0 0
    %1135 = vmatprep.subr.bf16.mxu0 0
    %1136 = vmatpush2.bf16.msra.mxu0 0
    %1137 = vmatprep.subr.bf16.mxu0 0
    %1138 = vmatpush2.bf16.msra.mxu0 0
    %1139 = vmatprep.subr.bf16.mxu0 0
    %1140 = vmatpush2.bf16.msra.mxu0 0
    %1141 = vmatprep.subr.bf16.mxu0 0
    %1142 = vmatpush2.bf16.msra.mxu0 0
    %1143 = vmatprep.subr.bf16.mxu0 0
    %1144 = vmatpush2.bf16.msra.mxu0 0
    %1145 = vmatprep.subr.bf16.mxu0 0
    %1146 = vmatpush2.bf16.msra.mxu0 0
    %1147 = vmatprep.mubr.bf16.mxu0 0
    %1148 = vmatmul.mubr.bf16.gmra.mxu0 %v1110
    %v1149 = vpop.f32.mrf.mxu0
    %v1150 = vadd.f32 0.0, %v1149
    %v1151 = vpop.f32.mrf.mxu0
    %v1152 = vpop.f32.mrf.mxu0
    %v1153 = vpop.f32.mrf.mxu0
    %1154 = vdwg.mxu0
    %1155 = vrot.lane.b32.xlu0 %v163, 40
    %v1156 = vpop.permute.xlu0 %1155
    %v1158 = vsel %vm167, %v1106, 0
    %v1161 = vsel %vm294, %v1156, 0
    %1163 = vmatprep.subr.bf16.mxu0 0
    %1164 = vmatpush1.bf16.msra.mxu0 0
    %1165 = vmatprep.subr.bf16.mxu0 0
    %1166 = vmatpush1.bf16.msra.mxu0 0
    %1167 = vmatprep.subr.bf16.mxu0 0
    %1168 = vmatpush1.bf16.msra.mxu0 0
    %1169 = vmatprep.subr.bf16.mxu0 0
    %1170 = vmatpush1.bf16.msra.mxu0 0
    %1171 = vmatprep.subr.bf16.mxu0 0
    %1172 = vmatpush1.bf16.msra.mxu0 0
    %1173 = vmatprep.subr.bf16.mxu0 0
    %1174 = vmatpush1.bf16.msra.mxu0 0
    %1175 = vmatprep.subr.bf16.mxu0 0
    %1176 = vmatpush1.bf16.msra.mxu0 0
    %1177 = vmatprep.subr.bf16.mxu0 0
    %1178 = vmatpush1.bf16.msra.mxu0 %v1161
    %1179 = vmatprep.subr.bf16.mxu0 0
    %1180 = vmatpush2.bf16.msra.mxu0 0
    %1181 = vmatprep.subr.bf16.mxu0 0
    %1182 = vmatpush2.bf16.msra.mxu0 0
    %1183 = vmatprep.subr.bf16.mxu0 0
    %1184 = vmatpush2.bf16.msra.mxu0 0
    %1185 = vmatprep.subr.bf16.mxu0 0
    %1186 = vmatpush2.bf16.msra.mxu0 0
    %1187 = vmatprep.subr.bf16.mxu0 0
    %1188 = vmatpush2.bf16.msra.mxu0 0
    %1189 = vmatprep.subr.bf16.mxu0 0
    %1190 = vmatpush2.bf16.msra.mxu0 0
    %1191 = vmatprep.subr.bf16.mxu0 0
    %1192 = vmatpush2.bf16.msra.mxu0 0
    %1193 = vmatprep.subr.bf16.mxu0 0
    %1194 = vmatpush2.bf16.msra.mxu0 0
    %1195 = vmatprep.mubr.bf16.mxu0 0
    %1196 = vmatmul.mubr.bf16.gmra.mxu0 %v1158
    %v1197 = vpop.f32.mrf.mxu0
    %v1198 = vadd.f32 0.0, %v1197
    %v1199 = vpop.f32.mrf.mxu0
    %v1200 = vpop.f32.mrf.mxu0
    %v1201 = vpop.f32.mrf.mxu0
    %1202 = vdwg.mxu0
    %v1203 = vpack.c.bf16 %v1198, %v1150
    %s1204 = scalar_lea.vmem [#allocation2], 12
    %v1205 = vld [vmem:[%s1204] sm:$0xf]
    %v1207 = vsel %vm167, %v1203, 0
    %v1210 = vsel %vm294, %v1205, 0
    %1212 = vmatprep.subr.bf16.mxu0 0
    %1213 = vmatpush1.bf16.msra.mxu0 0
    %1214 = vmatprep.subr.bf16.mxu0 0
    %1215 = vmatpush1.bf16.msra.mxu0 0
    %1216 = vmatprep.subr.bf16.mxu0 0
    %1217 = vmatpush1.bf16.msra.mxu0 0
    %1218 = vmatprep.subr.bf16.mxu0 0
    %1219 = vmatpush1.bf16.msra.mxu0 0
    %1220 = vmatprep.subr.bf16.mxu0 0
    %1221 = vmatpush1.bf16.msra.mxu0 0
    %1222 = vmatprep.subr.bf16.mxu0 0
    %1223 = vmatpush1.bf16.msra.mxu0 0
    %1224 = vmatprep.subr.bf16.mxu0 0
    %1225 = vmatpush1.bf16.msra.mxu0 0
    %1226 = vmatprep.subr.bf16.mxu0 0
    %1227 = vmatpush1.bf16.msra.mxu0 %v1210
    %1228 = vmatprep.subr.bf16.mxu0 0
    %1229 = vmatpush2.bf16.msra.mxu0 0
    %1230 = vmatprep.subr.bf16.mxu0 0
    %1231 = vmatpush2.bf16.msra.mxu0 0
    %1232 = vmatprep.subr.bf16.mxu0 0
    %1233 = vmatpush2.bf16.msra.mxu0 0
    %1234 = vmatprep.subr.bf16.mxu0 0
    %1235 = vmatpush2.bf16.msra.mxu0 0
    %1236 = vmatprep.subr.bf16.mxu0 0
    %1237 = vmatpush2.bf16.msra.mxu0 0
    %1238 = vmatprep.subr.bf16.mxu0 0
    %1239 = vmatpush2.bf16.msra.mxu0 0
    %1240 = vmatprep.subr.bf16.mxu0 0
    %1241 = vmatpush2.bf16.msra.mxu0 0
    %1242 = vmatprep.subr.bf16.mxu0 0
    %1243 = vmatpush2.bf16.msra.mxu0 0
    %1244 = vmatprep.mubr.bf16.mxu0 0
    %1245 = vmatmul.mubr.bf16.gmra.mxu0 %v1207
    %v1246 = vpop.f32.mrf.mxu0
    %v1247 = vadd.f32 0.0, %v1246
    %v1248 = vpop.f32.mrf.mxu0
    %v1249 = vpop.f32.mrf.mxu0
    %v1250 = vadd.f32 0.0, %v1249
    %v1251 = vpop.f32.mrf.mxu0
    %1252 = vdwg.mxu0
    %v1253 = vadd.f32 %v979, %v1247
    %v1254 = vadd.f32 %v980, %v1250
    %v1255 = vlaneseq
    %v1256 = vshrl.u32 %v1255, 7
    %v1257 = vsub.s32 2, %v1256
    %v1258 = vrot.slane %v55, %v1257
    %v1259 = vadd.f32 %v1253, %v1258
    %v1260 = vadd.f32 %v1254, %v1258
    %v1261 = vlaneseq
    %v1262 = vshrl.u32 %v1261, 7
    %v1263 = vsub.s32 3, %v1262
    %v1264 = vrot.slane %v55, %v1263
    %v1265 = vmul.f32 %v1259, %v1264
    %v1266 = vmul.f32 %v1260, %v1264
    %v1267 = vadd.f32 %v1265, %v53
    %v1268 = vadd.f32 %v1266, %v54
    %v1269 = vsel %vm57, %v1267, 0.0
    %1270 = vadd.xlane.f32.xlu0 %v1269
    %v1271 = vpop.xlane.xlu0 %1270
    %v1272 = vsel %vm57, %v1268, 0.0
    %1273 = vadd.xlane.f32.xlu0 %v1272
    %v1274 = vpop.xlane.xlu0 %1273
    %v1275 = vmul.f32 %v1271, %v64
    %v1276 = vmul.f32 %v1274, %v64
    %v1277 = vsub.f32 %v1267, %v1275
    %v1278 = vsub.f32 %v1268, %v1276
    %v1279 = vmul.f32 %v1277, %v1277
    %v1280 = vmul.f32 %v1278, %v1278
    %v1281 = vsel %vm57, %v1279, 0.0
    %1282 = vadd.xlane.f32.xlu0 %v1281
    %v1283 = vpop.xlane.xlu0 %1282
    %v1284 = vsel %vm57, %v1280, 0.0
    %1285 = vadd.xlane.f32.xlu0 %v1284
    %v1286 = vpop.xlane.xlu0 %1285
    %v1287 = vmul.f32 %v1283, %v64
    %v1288 = vmul.f32 %v1286, %v64
    %v1289 = vadd.f32 %v1287, 1e-05
    %v1290 = vadd.f32 %v1288, 1e-05
    %v1291 = vrsqrt.pop %v1289
    %v1292 = vrsqrt.pop %v1290
    %v1293 = vmul.f32 %v1277, %v1291
    %v1294 = vmul.f32 %v1278, %v1292
    %v1295 = vlaneseq
    %v1296 = vshrl.u32 %v1295, 7
    %v1297 = vsub.s32 4, %v1296
    %v1298 = vrot.slane %v55, %v1297
    %v1299 = vmul.f32 %v1293, %v1298
    %v1300 = vmul.f32 %v1294, %v1298
    %v1301 = vlaneseq
    %v1302 = vshrl.u32 %v1301, 7
    %v1303 = vsub.s32 5, %v1302
    %v1304 = vrot.slane %v55, %v1303
    %v1305 = vadd.f32 %v1299, %v1304
    %v1306 = vadd.f32 %v1300, %v1304
    %v1307 = vpack.c.bf16 %v1306, %v1305
    %v1308 = vld [vmem:[#allocation5] sm:$0xf]
    %v1309 = vld [vmem:[#allocation5 + $0x4] sm:$0xf]
    %v1310 = vld [vmem:[#allocation5 + $0x8] sm:$0xf]
    %v1311 = vld [vmem:[#allocation5 + $0xc] sm:$0xf]
    %v1312 = vlaneseq
    %v1313 = vshrl.u32 %v1312, 7
    %v1314 = vsub.s32 1, %v1313
    %v1315 = vrot.slane %v56, %v1314
    %v1320 = vunpack.c.l.b16 %v1308
    %v1321 = vunpack.c.l.b16 %v1309
    %v1322 = vunpack.c.l.b16 %v1310
    %v1323 = vunpack.c.l.b16 %v1311
    %v1324 = vpack.c.b16 %v1321, %v1320
    %v1325 = vpack.c.b16 %v1323, %v1322
    %v1329 = vsel %vm57, %v1307, 0
    %1331 = vmatprep.subr.bf16.mxu0 0
    %1332 = vmatpush1.bf16.msra.mxu0 0
    %1333 = vmatprep.subr.bf16.mxu0 0
    %1334 = vmatpush1.bf16.msra.mxu0 0
    %1335 = vmatprep.subr.bf16.mxu0 0
    %1336 = vmatpush1.bf16.msra.mxu0 0
    %1337 = vmatprep.subr.bf16.mxu0 0
    %1338 = vmatpush1.bf16.msra.mxu0 0
    %1339 = vmatprep.subr.bf16.mxu0 0
    %1340 = vmatpush1.bf16.msra.mxu0 0
    %1341 = vmatprep.subr.bf16.mxu0 0
    %1342 = vmatpush1.bf16.msra.mxu0 0
    %1343 = vmatprep.subr.bf16.mxu0 0
    %1344 = vmatpush1.bf16.msra.mxu0 %v1325
    %1345 = vmatprep.subr.bf16.mxu0 0
    %1346 = vmatpush1.bf16.msra.mxu0 %v1324
    %1347 = vmatprep.subr.bf16.mxu0 0
    %1348 = vmatpush2.bf16.msra.mxu0 0
    %1349 = vmatprep.subr.bf16.mxu0 0
    %1350 = vmatpush2.bf16.msra.mxu0 0
    %1351 = vmatprep.subr.bf16.mxu0 0
    %1352 = vmatpush2.bf16.msra.mxu0 0
    %1353 = vmatprep.subr.bf16.mxu0 0
    %1354 = vmatpush2.bf16.msra.mxu0 0
    %1355 = vmatprep.subr.bf16.mxu0 0
    %1356 = vmatpush2.bf16.msra.mxu0 0
    %1357 = vmatprep.subr.bf16.mxu0 0
    %1358 = vmatpush2.bf16.msra.mxu0 0
    %1359 = vmatprep.subr.bf16.mxu0 0
    %1360 = vmatpush2.bf16.msra.mxu0 0
    %1361 = vmatprep.subr.bf16.mxu0 0
    %1362 = vmatpush2.bf16.msra.mxu0 0
    %1363 = vmatprep.mubr.bf16.mxu0 0
    %1364 = vmatmul.mubr.bf16.gmra.mxu0 %v1329
    %v1365 = vpop.f32.mrf.mxu0
    %v1366 = vadd.f32 %v1315, %v1365
    %v1367 = vpop.f32.mrf.mxu0
    %v1368 = vpop.f32.mrf.mxu0
    %v1369 = vadd.f32 %v1315, %v1368
    %v1370 = vpop.f32.mrf.mxu0
    %1371 = vdwg.mxu0
    %v1372 = vmul.f32 %v1366, 0.5
    %v1373 = vmul.f32 %v1369, 0.5
    %v1374 = vmul.f32 %v1366, 0.044715
    %v1375 = vmul.f32 %v1369, 0.044715
    %v1376 = vmul.f32 %v1374, %v1366
    %v1377 = vmul.f32 %v1375, %v1369
    %v1378 = vmul.f32 %v1376, %v1366
    %v1379 = vmul.f32 %v1377, %v1369
    %v1380 = vadd.f32 %v1366, %v1378
    %v1381 = vadd.f32 %v1369, %v1379
    %v1382 = vmul.f32 %v1380, 0.7978846
    %v1383 = vmul.f32 %v1381, 0.7978846
    %v1384 = vtanh.pop %v1382
    %v1385 = vtanh.pop %v1383
    %v1386 = vadd.f32 %v1384, 1.0
    %v1387 = vadd.f32 %v1385, 1.0
    %v1388 = vmul.f32 %v1372, %v1386
    %v1389 = vmul.f32 %v1373, %v1387
    %1392 = vrot.lane.b32.xlu0 %v1388, 64
    %v1393 = vpop.permute.xlu0 %1392
    %1394 = vrot.lane.b32.xlu0 %v1389, 64
    %v1395 = vpop.permute.xlu0 %1394
    %v1398 = vmul.f32 %v1366, %v1393
    %v1399 = vmul.f32 %v1369, %v1395
    %v1400 = vpack.c.bf16 %v1399, %v1398
    %v1401 = vld [vmem:[%s5] sm:$0xf]
    %v1402 = vld [vmem:[%s5 + $0x4] sm:$0xf]
    %v1403 = vld [vmem:[%s5 + $0x8] sm:$0xf]
    %v1404 = vld [vmem:[%s5 + $0xc] sm:$0xf]
    %v1405 = vld [vmem:[%s5 + $0x10] sm:$0xf]
    %v1406 = vld [vmem:[%s5 + $0x14] sm:$0xf]
    %v1407 = vld [vmem:[%s5 + $0x18] sm:$0xf]
    %v1408 = vld [vmem:[%s5 + $0x1c] sm:$0xf]
    %v1409 = vlaneseq
    %v1410 = vshrl.u32 %v1409, 7
    %v1411 = vsub.s32 6, %v1410
    %v1412 = vrot.slane %v55, %v1411
    %v1421 = vunpack.c.l.b16 %v1401
    %v1422 = vunpack.c.l.b16 %v1402
    %v1423 = vunpack.c.l.b16 %v1403
    %v1424 = vunpack.c.l.b16 %v1404
    %v1425 = vunpack.c.l.b16 %v1405
    %v1426 = vunpack.c.l.b16 %v1406
    %v1427 = vunpack.c.l.b16 %v1407
    %v1428 = vunpack.c.l.b16 %v1408
    %v1429 = vpack.c.b16 %v1422, %v1421
    %v1430 = vpack.c.b16 %v1424, %v1423
    %v1431 = vpack.c.b16 %v1426, %v1425
    %v1432 = vpack.c.b16 %v1428, %v1427
    %vm1437 = vcmask 523264
    %v1439 = vsel %vm1437, %v1400, 0
    %1441 = vmatprep.subr.bf16.mxu0 0
    %1442 = vmatpush1.bf16.msra.mxu0 0
    %1443 = vmatprep.subr.bf16.mxu0 0
    %1444 = vmatpush1.bf16.msra.mxu0 0
    %1445 = vmatprep.subr.bf16.mxu0 0
    %1446 = vmatpush1.bf16.msra.mxu0 0
    %1447 = vmatprep.subr.bf16.mxu0 0
    %1448 = vmatpush1.bf16.msra.mxu0 0
    %1449 = vmatprep.subr.bf16.mxu0 0
    %1450 = vmatpush1.bf16.msra.mxu0 %v1432
    %1451 = vmatprep.subr.bf16.mxu0 0
    %1452 = vmatpush1.bf16.msra.mxu0 %v1431
    %1453 = vmatprep.subr.bf16.mxu0 0
    %1454 = vmatpush1.bf16.msra.mxu0 %v1430
    %1455 = vmatprep.subr.bf16.mxu0 0
    %1456 = vmatpush1.bf16.msra.mxu0 %v1429
    %1457 = vmatprep.subr.bf16.mxu0 0
    %1458 = vmatpush2.bf16.msra.mxu0 0
    %1459 = vmatprep.subr.bf16.mxu0 0
    %1460 = vmatpush2.bf16.msra.mxu0 0
    %1461 = vmatprep.subr.bf16.mxu0 0
    %1462 = vmatpush2.bf16.msra.mxu0 0
    %1463 = vmatprep.subr.bf16.mxu0 0
    %1464 = vmatpush2.bf16.msra.mxu0 0
    %1465 = vmatprep.subr.bf16.mxu0 0
    %1466 = vmatpush2.bf16.msra.mxu0 0
    %1467 = vmatprep.subr.bf16.mxu0 0
    %1468 = vmatpush2.bf16.msra.mxu0 0
    %1469 = vmatprep.subr.bf16.mxu0 0
    %1470 = vmatpush2.bf16.msra.mxu0 0
    %1471 = vmatprep.subr.bf16.mxu0 0
    %1472 = vmatpush2.bf16.msra.mxu0 0
    %1473 = vmatprep.mubr.bf16.mxu0 0
    %1474 = vmatmul.mubr.bf16.gmra.mxu0 %v1439
    %v1475 = vpop.f32.mrf.mxu0
    %v1476 = vadd.f32 %v1412, %v1475
    %v1477 = vpop.f32.mrf.mxu0
    %v1478 = vpop.f32.mrf.mxu0
    %v1479 = vadd.f32 %v1412, %v1478
    %v1480 = vpop.f32.mrf.mxu0
    %1481 = vdwg.mxu0
    %v1482 = vlaneseq
    %v1483 = vshrl.u32 %v1482, 7
    %v1484 = vsub.s32 7, %v1483
    %v1485 = vrot.slane %v55, %v1484
    %v1486 = vmul.f32 %v1476, %v1485
    %v1487 = vmul.f32 %v1479, %v1485
    %v1488 = vadd.f32 %v1486, %v1267
    %v1489 = vadd.f32 %v1487, %v1268
    %1490 = vst.msk [vmem:[#allocation7] sm:$0xff] %vm57, %v1488
    %1491 = vst.msk [vmem:[#allocation7 + $0x8] sm:$0xff] %vm57, %v1489
    // Predicated region
    $region34: #{tpu_custom_call.1} parent=1 // pred_check
      _
    $region35: #{tpu_custom_call.1} parent=1 // pred_check_branch
      %1493 = sbr.rel (0) target = $region37
    $region36: #{tpu_custom_call.1} parent=1 // pred_region
      %s1495 = ssub.s32 256, 256
      %1496 = vsyncadd [#allocation4], %s1495
      %s1497 = sshll.u32 [#allocation7], 4
      %s1498 = int_to_ptr.vmem [resolvable:$true] %s1497
      %1503 = dma.vmem_to_hbm [thread:$0]  %s1498, 256, %s6, [#allocation4], 128, 128, 8
    $region37: #{tpu_custom_call.1} parent=1 // pred_fallthru
      _
    // Predicated region
    $region38: #{tpu_custom_call.1} parent=1 // pred_check
      _
    $region39: #{tpu_custom_call.1} parent=1 // pred_check_branch
      %1505 = sbr.rel (0) target = $region41
    $region40: #{tpu_custom_call.1} parent=1 // pred_region
      %1506 = dma.done [#allocation4], 256
    $region41: #{tpu_custom_call.1} parent=1 // pred_fallthru
      _
    %1507 = vsyncpa [#allocation3], 1
    %1508 = vsyncpa [#allocation6], 1
    %1509 = vsyncpa [#allocation4], 1

</llo_original>
